<compile_context>
chip_gen: v5e
topology: v5e:2x2
jax: 0.10.0
libtpu: 0.0.40
codegen_flags: <defaults>
</compile_context>

<pallas_src>
import functools

import jax
import jax.numpy as jnp
from jax import lax
from jax.experimental import pallas as pl
from jax.experimental.pallas import tpu as pltpu


# ----------------------------------------------------------------------------
# Fused Pallas kernel: all LSTM layers + MLP head (one batch tile per grid step)
# ----------------------------------------------------------------------------
def _soh_lstm_fused_kernel(*refs, hidden_size, num_layers, seq_len, batch_tile,
                           input_size, mxu_dtype):
    """refs layout:
      refs[0]                    : x        (T, Bt, D)    time-major batch tile
      refs[1+3l .. 3+3l]         : layer l  W_ih (D_l,4H), W_hh (H,4H), b (1,4H)  [b = b_ih+b_hh]
      next 4                     : head     W1 (H,H/2), b1 (1,H/2), w2_row (1,H/2), b2 (1,1)
      next 1                     : out      (Bt, 1)
      last 2 (scratch)           : gx   VMEM (T*Bt, 4H)   hoisted input projection
                                   hseq VMEM (T*Bt, H)    inter-layer hidden sequence
    """
    H = hidden_size
    T = seq_len
    Bt = batch_tile

    x_ref = refs[0]
    idx = 1
    lstm_refs = []
    for _ in range(num_layers):
        lstm_refs.append((refs[idx], refs[idx + 1], refs[idx + 2]))
        idx += 3
    w1_ref, b1_ref, w2_ref, b2_ref = refs[idx:idx + 4]
    idx += 4
    out_ref = refs[idx]
    gx_ref = refs[idx + 1]
    hseq_ref = refs[idx + 2]

    h_last = jnp.zeros((Bt, H), jnp.float32)

    for layer in range(num_layers):
        wih_ref, whh_ref, b_ref = lstm_refs[layer]

        # Hoisted input projection + folded bias: one batched MXU matmul over the whole
        # sequence of this batch tile (removes the x-projection from the serial chain).
        if layer == 0:
            layer_in = x_ref[...].reshape(T * Bt, input_size)
        else:
            layer_in = hseq_ref[...]
        gx_ref[...] = (
            jnp.dot(layer_in.astype(mxu_dtype), wih_ref[...].astype(mxu_dtype),
                    preferred_element_type=jnp.float32)
            + b_ref[...]
        )

        whh = whh_ref[...].astype(mxu_dtype)      # (H, 4H), loop-invariant vregs
        store_seq = layer < (num_layers - 1)      # last layer only needs final h

        def make_body(whh, store_seq):
            def body(t, carry):
                h, c = carry
                row = pl.multiple_of(t * Bt, Bt)          # sublane-aligned offset
                gates = gx_ref[pl.ds(row, Bt), :] + jnp.dot(
                    h.astype(mxu_dtype), whh, preferred_element_type=jnp.float32)
                # Full-width activations (2 EUP pushes on the (Bt, 4H) vreg), then slice.
                # sigmoid(x) == 0.5*tanh(0.5*x) + 0.5 : single EUP op instead of exp+recip.
                sig = 0.5 * jnp.tanh(0.5 * gates) + 0.5
                th = jnp.tanh(gates)
                i_g = sig[:, 0 * H:1 * H]
                f_g = sig[:, 1 * H:2 * H]
                g_g = th[:, 2 * H:3 * H]
                o_g = sig[:, 3 * H:4 * H]
                c_new = f_g * c + i_g * g_g               # f32 VPU state update
                h_new = o_g * jnp.tanh(c_new)
                if store_seq:
                    hseq_ref[pl.ds(row, Bt), :] = h_new
                return (h_new, c_new)
            return body

        h0 = jnp.zeros((Bt, H), jnp.float32)
        c0 = jnp.zeros((Bt, H), jnp.float32)
        h_last, _ = lax.fori_loop(0, T, make_body(whh, store_seq), (h0, c0),
                                  unroll=min(8, T))       # bounded unroll

    # Fused MLP head on the final hidden state: Linear -> LeakyReLU(0.01) -> Linear.
    z = jnp.dot(h_last.astype(mxu_dtype), w1_ref[...].astype(mxu_dtype),
                preferred_element_type=jnp.float32) + b1_ref[...]
    z = jnp.where(z > 0.0, z, 0.01 * z)
    # Final Linear(H/2 -> 1) as VPU multiply + lane reduction (avoid a 1-column MXU matmul).
    y = jnp.sum(z * w2_ref[...], axis=-1, keepdims=True) + b2_ref[...]
    out_ref[...] = y.astype(out_ref.dtype)


# ----------------------------------------------------------------------------
# Wrapper
# ----------------------------------------------------------------------------
def _whole_spec(shape):
    n = len(shape)
    return pl.BlockSpec(shape, lambda b, _n=n: (0,) * _n)


def _padded_block_bytes(shape, dtype):
    """Conservative VMEM footprint of one block ((8,128)-padded last two dims)."""
    shape = tuple(int(s) for s in shape)
    if len(shape) < 2:
        shape = (1,) * (2 - len(shape)) + shape
    lead = 1
    for s in shape[:-2]:
        lead *= s
    sub = -(-shape[-2] // 8) * 8
    lane = -(-shape[-1] // 128) * 128
    return lead * sub * lane * jnp.dtype(dtype).itemsize


def soh_lstm_forward(x, params, hidden_size, num_layers, *,
                     use_bf16_matmul=False, batch_tile=None):
    """x: (B, T, input_size) float32 -> (B,) float32."""
    B, T, D = x.shape
    H = hidden_size
    mxu_dtype = jnp.bfloat16 if use_bf16_matmul else jnp.float32

    sub = 16 if use_bf16_matmul else 8           # bf16 packing -> 16-row batch padding
    Bp = ((B + sub - 1) // sub) * sub
    Bt = min(batch_tile if batch_tile is not None else 256, Bp)
    Bt = max(sub, (Bt // sub) * sub)
    if Bp % Bt != 0:
        Bp = ((Bp + Bt - 1) // Bt) * Bt
    num_tiles = Bp // Bt

    x_tm = jnp.transpose(x, (1, 0, 2))                       # (T, B, D) time-major
    if Bp != B:
        x_tm = jnp.pad(x_tm, ((0, 0), (0, Bp - B), (0, 0)))  # zero-pad batch

    args = [x_tm]
    in_specs = [pl.BlockSpec((T, Bt, D), lambda b: (0, b, 0))]   # batch-tiled input
    for layer in range(num_layers):
        w_ih, w_hh, b = params["lstm"][layer]
        w_ih = w_ih.astype(mxu_dtype)                        # MXU operands only
        w_hh = w_hh.astype(mxu_dtype)
        args += [w_ih, w_hh, b]
        in_specs += [_whole_spec(w_ih.shape), _whole_spec(w_hh.shape),
                     _whole_spec(b.shape)]
    w1, b1, w2, b2 = params["fc"]
    w1 = w1.astype(mxu_dtype)
    w2_row = jnp.transpose(w2)                               # (1, H/2) for VPU head
    args += [w1, b1, w2_row, b2]
    in_specs += [_whole_spec(w1.shape), _whole_spec(b1.shape),
                 _whole_spec(w2_row.shape), _whole_spec(b2.shape)]

    out_spec = pl.BlockSpec((Bt, 1), lambda b: (b, 0))

    scratch_shapes = [
        pltpu.VMEM((T * Bt, 4 * H), jnp.float32),   # hoisted input projection (per tile)
        pltpu.VMEM((T * Bt, H), jnp.float32),       # inter-layer hidden sequence (per tile)
    ]

    # Explicit scoped-VMEM budget: double-buffered blocks + scratch + slack.
    block_bytes = sum(_padded_block_bytes(a.shape, a.dtype) for a in args)
    block_bytes += _padded_block_bytes((Bt, 1), jnp.float32)
    scratch_bytes = (_padded_block_bytes((T * Bt, 4 * H), jnp.float32)
                     + _padded_block_bytes((T * Bt, H), jnp.float32))
    vmem_limit = 2 * block_bytes + scratch_bytes + (2 << 20)
    vmem_limit = int(min(max(vmem_limit, 32 << 20), 48 << 20))

    kernel = functools.partial(
        _soh_lstm_fused_kernel,
        hidden_size=H, num_layers=num_layers, seq_len=T, batch_tile=Bt,
        input_size=D, mxu_dtype=mxu_dtype)

    out = pl.pallas_call(
        kernel,
        out_shape=jax.ShapeDtypeStruct((Bp, 1), jnp.float32),
        grid=(num_tiles,),
        in_specs=in_specs,
        out_specs=out_spec,
        scratch_shapes=scratch_shapes,
        compiler_params=pltpu.CompilerParams(
            dimension_semantics=("parallel",),
            vmem_limit_bytes=vmem_limit),
    )(*args)
    return out[:B, 0]                                # drop batch padding, squeeze(-1)


# ----------------------------------------------------------------------------
# Deterministic parameter init (matches nn.LSTM / nn.Linear shapes)
# ----------------------------------------------------------------------------
def init_params(key, input_size, hidden_size, num_layers):
    params = {"lstm": [], "fc": None}
    keys = jax.random.split(key, num_layers * 4 + 4)
    k = 0
    for layer in range(num_layers):
        in_dim = input_size if layer == 0 else hidden_size
        scale = 1.0 / jnp.sqrt(hidden_size)
        # torch shapes: weight_ih (4H, in_dim), weight_hh (4H, H) -> stored transposed
        w_ih = scale * jax.random.normal(keys[k], (in_dim, 4 * hidden_size), jnp.float32); k += 1
        w_hh = scale * jax.random.normal(keys[k], (hidden_size, 4 * hidden_size), jnp.float32); k += 1
        b_ih = scale * jax.random.normal(keys[k], (4 * hidden_size,), jnp.float32); k += 1
        b_hh = scale * jax.random.normal(keys[k], (4 * hidden_size,), jnp.float32); k += 1
        b = (b_ih + b_hh).reshape(1, 4 * hidden_size)
        params["lstm"].append((w_ih, w_hh, b))
    h2 = hidden_size // 2
    w1 = (1.0 / jnp.sqrt(hidden_size)) * jax.random.normal(keys[k], (hidden_size, h2), jnp.float32); k += 1
    b1 = (1.0 / jnp.sqrt(hidden_size)) * jax.random.normal(keys[k], (1, h2), jnp.float32); k += 1
    w2 = (1.0 / jnp.sqrt(h2)) * jax.random.normal(keys[k], (h2, 1), jnp.float32); k += 1
    b2 = (1.0 / jnp.sqrt(h2)) * jax.random.normal(keys[k], (1, 1), jnp.float32); k += 1
    params["fc"] = (w1, b1, w2, b2)
    return params


# ----------------------------------------------------------------------------
# Pure-JAX reference (same math) for a correctness sanity check
# ----------------------------------------------------------------------------
def soh_lstm_reference(x, params, hidden_size, num_layers):
    seq = jnp.transpose(x, (1, 0, 2))
    B = x.shape[0]
    for layer in range(num_layers):
        w_ih, w_hh, b = params["lstm"][layer]

        def step(carry, x_t):
            h, c = carry
            gates = x_t @ w_ih + h @ w_hh + b[0]
            H = hidden_size
            i_g = jax.nn.sigmoid(gates[:, 0 * H:1 * H])
            f_g = jax.nn.sigmoid(gates[:, 1 * H:2 * H])
            g_g = jnp.tanh(gates[:, 2 * H:3 * H])
            o_g = jax.nn.sigmoid(gates[:, 3 * H:4 * H])
            c = f_g * c + i_g * g_g
            h = o_g * jnp.tanh(c)
            return (h, c), h

        h0 = jnp.zeros((B, hidden_size), jnp.float32)
        (_, _), seq = lax.scan(step, (h0, h0), seq)
    h_last = seq[-1]
    w1, b1, w2, b2 = params["fc"]
    z = h_last @ w1 + b1[0]
    z = jnp.where(z > 0, z, 0.01 * z)
    y = z @ w2 + b2[0]
    return y[:, 0]


if __name__ == "__main__":
    INPUT_SIZE = 4
    HIDDEN_SIZE = 32
    NUM_LAYERS = 2
    BATCH = 2
    SEQ = 8

    root = jax.random.PRNGKey(0)
    kx, kp = jax.random.split(root)
    x = jax.random.normal(kx, (BATCH, SEQ, INPUT_SIZE), jnp.float32)
    params = init_params(kp, INPUT_SIZE, HIDDEN_SIZE, NUM_LAYERS)

    ref = jax.block_until_ready(soh_lstm_reference(x, params, HIDDEN_SIZE, NUM_LAYERS))

    # f32 MXU path: tight check against the pure-JAX reference.
    out = jax.block_until_ready(soh_lstm_forward(x, params, HIDDEN_SIZE, NUM_LAYERS))
    assert out.shape == (BATCH,)
    assert jnp.allclose(out, ref, atol=2e-4, rtol=2e-4), (out, ref)

    # bf16 MXU-operand path (v6e/v7x win): looser tolerance, state/VPU math stays f32.
    out_bf16 = jax.block_until_ready(
        soh_lstm_forward(x, params, HIDDEN_SIZE, NUM_LAYERS, use_bf16_matmul=True))
    assert out_bf16.shape == (BATCH,)
    assert jnp.allclose(out_bf16, ref, atol=1e-1, rtol=1e-1), (out_bf16, ref)

    print("KERNEL_OK")
</pallas_src>

<mosaic_0001>
module attributes {stable_mosaic.version = 11 : i64} {
  func.func @_soh_lstm_fused_kernel(%arg0: i32, %arg1: memref<8x8x4xf32, #tpu.memory_space<vmem>>, %arg2: memref<4x128xf32, #tpu.memory_space<vmem>>, %arg3: memref<32x128xf32, #tpu.memory_space<vmem>>, %arg4: memref<1x128xf32, #tpu.memory_space<vmem>>, %arg5: memref<32x128xf32, #tpu.memory_space<vmem>>, %arg6: memref<32x128xf32, #tpu.memory_space<vmem>>, %arg7: memref<1x128xf32, #tpu.memory_space<vmem>>, %arg8: memref<32x16xf32, #tpu.memory_space<vmem>>, %arg9: memref<1x16xf32, #tpu.memory_space<vmem>>, %arg10: memref<1x16xf32, #tpu.memory_space<vmem>>, %arg11: memref<1x1xf32, #tpu.memory_space<vmem>>, %arg12: memref<8x1xf32, #tpu.memory_space<vmem>>, %arg13: memref<64x128xf32, #tpu.memory_space<vmem>>, %arg14: memref<64x32xf32, #tpu.memory_space<vmem>>) attributes {dimension_semantics = [#tpu.dimension_semantics<parallel>], iteration_bounds = array<i64: 1>, scalar_prefetch = 0 : i64, scratch_operands = 2 : i64, tpu.core_type = #tpu.core_type<tc>, window_params = [{transform_indices = @transform_0, window_bounds = array<i64: 8, 8, 4>}, {pipeline_mode = #tpu.pipeline_mode<synchronous>, transform_indices = @transform_1, window_bounds = array<i64: 4, 128>}, {pipeline_mode = #tpu.pipeline_mode<synchronous>, transform_indices = @transform_2, window_bounds = array<i64: 32, 128>}, {pipeline_mode = #tpu.pipeline_mode<synchronous>, transform_indices = @transform_3, window_bounds = array<i64: 1, 128>}, {pipeline_mode = #tpu.pipeline_mode<synchronous>, transform_indices = @transform_4, window_bounds = array<i64: 32, 128>}, {pipeline_mode = #tpu.pipeline_mode<synchronous>, transform_indices = @transform_5, window_bounds = array<i64: 32, 128>}, {pipeline_mode = #tpu.pipeline_mode<synchronous>, transform_indices = @transform_6, window_bounds = array<i64: 1, 128>}, {pipeline_mode = #tpu.pipeline_mode<synchronous>, transform_indices = @transform_7, window_bounds = array<i64: 32, 16>}, {pipeline_mode = #tpu.pipeline_mode<synchronous>, transform_indices = @transform_8, window_bounds = array<i64: 1, 16>}, {pipeline_mode = #tpu.pipeline_mode<synchronous>, transform_indices = @transform_9, window_bounds = array<i64: 1, 16>}, {pipeline_mode = #tpu.pipeline_mode<synchronous>, transform_indices = @transform_10, window_bounds = array<i64: 1, 1>}, {transform_indices = @transform_11, window_bounds = array<i64: 8, 1>}]} {
    %c0 = arith.constant 0 : index
    %c0_0 = arith.constant 0 : index
    %c0_1 = arith.constant 0 : index
    %0 = vector.load %arg1[%c0, %c0_0, %c0_1] : memref<8x8x4xf32, #tpu.memory_space<vmem>>, vector<8x8x4xf32>
    %1 = vector.shape_cast %0 : vector<8x8x4xf32> to vector<64x4xf32>
    %c0_2 = arith.constant 0 : index
    %c0_3 = arith.constant 0 : index
    %2 = vector.load %arg2[%c0_2, %c0_3] : memref<4x128xf32, #tpu.memory_space<vmem>>, vector<4x128xf32>
    %cst = arith.constant dense<0.000000e+00> : vector<64x128xf32>
    %3 = tpu.matmul %1, %2, %cst {dimension_numbers = #tpu.dot_dimension_numbers<[1], [0], [0], [1], [0, 0, 1, 1], [], []>} : vector<64x4xf32>, vector<4x128xf32>, vector<64x128xf32> -> vector<64x128xf32>
    %c0_4 = arith.constant 0 : index
    %c0_5 = arith.constant 0 : index
    %4 = vector.load %arg4[%c0_4, %c0_5] : memref<1x128xf32, #tpu.memory_space<vmem>>, vector<1x128xf32>
    %5 = vector.broadcast %4 : vector<1x128xf32> to vector<64x128xf32>
    %6 = arith.addf %3, %5 : vector<64x128xf32>
    %c0_6 = arith.constant 0 : index
    %c0_7 = arith.constant 0 : index
    %7 = vector.load %arg13[%c0_6, %c0_7] : memref<64x128xf32, #tpu.memory_space<vmem>>, vector<64x128xf32>
    tpu.vector_store %arg13[%c0_6, %c0_7], %6 {strides = array<i32>} : memref<64x128xf32, #tpu.memory_space<vmem>>, vector<64x128xf32>,
    %c0_8 = arith.constant 0 : index
    %c0_9 = arith.constant 0 : index
    %8 = vector.load %arg3[%c0_8, %c0_9] : memref<32x128xf32, #tpu.memory_space<vmem>>, vector<32x128xf32>
    %cst_10 = arith.constant 0.000000e+00 : f32
    %9 = vector.broadcast %cst_10 : f32 to vector<8x32xf32>
    %cst_11 = arith.constant 0.000000e+00 : f32
    %10 = vector.broadcast %cst_11 : f32 to vector<8x32xf32>
    %c0_i32 = arith.constant 0 : i32
    %c8_i32 = arith.constant 8 : i32
    %11 = arith.muli %c0_i32, %c8_i32 : i32
    %12 = tpu.assume_multiple %11, 8 : i32
    %13 = arith.index_cast %12 : i32 to index
    %c0_12 = arith.constant 0 : index
    %14 = vector.load %arg13[%13, %c0_12] : memref<64x128xf32, #tpu.memory_space<vmem>>, vector<8x128xf32>
    %cst_13 = arith.constant dense<0.000000e+00> : vector<8x128xf32>
    %15 = tpu.matmul %9, %8, %cst_13 {dimension_numbers = #tpu.dot_dimension_numbers<[1], [0], [0], [1], [0, 0, 1, 1], [], []>} : vector<8x32xf32>, vector<32x128xf32>, vector<8x128xf32> -> vector<8x128xf32>
    %16 = arith.addf %14, %15 : vector<8x128xf32>
    %cst_14 = arith.constant 5.000000e-01 : f32
    %17 = vector.broadcast %cst_14 : f32 to vector<8x128xf32>
    %18 = arith.mulf %17, %16 : vector<8x128xf32>
    %19 = math.tanh %18 : vector<8x128xf32>
    %cst_15 = arith.constant 5.000000e-01 : f32
    %20 = vector.broadcast %cst_15 : f32 to vector<8x128xf32>
    %21 = arith.mulf %20, %19 : vector<8x128xf32>
    %cst_16 = arith.constant 5.000000e-01 : f32
    %22 = vector.broadcast %cst_16 : f32 to vector<8x128xf32>
    %23 = arith.addf %21, %22 : vector<8x128xf32>
    %24 = math.tanh %16 : vector<8x128xf32>
    %25 = vector.extract_strided_slice %23 {offsets = [0, 0], sizes = [8, 32], strides = [1, 1]} : vector<8x128xf32> to vector<8x32xf32>
    %26 = vector.extract_strided_slice %23 {offsets = [0, 32], sizes = [8, 32], strides = [1, 1]} : vector<8x128xf32> to vector<8x32xf32>
    %27 = vector.extract_strided_slice %24 {offsets = [0, 64], sizes = [8, 32], strides = [1, 1]} : vector<8x128xf32> to vector<8x32xf32>
    %28 = vector.extract_strided_slice %23 {offsets = [0, 96], sizes = [8, 32], strides = [1, 1]} : vector<8x128xf32> to vector<8x32xf32>
    %29 = arith.mulf %26, %10 : vector<8x32xf32>
    %30 = arith.mulf %25, %27 : vector<8x32xf32>
    %31 = arith.addf %29, %30 : vector<8x32xf32>
    %32 = math.tanh %31 : vector<8x32xf32>
    %33 = arith.mulf %28, %32 : vector<8x32xf32>
    %34 = arith.index_cast %12 : i32 to index
    %c0_17 = arith.constant 0 : index
    %35 = vector.load %arg14[%34, %c0_17] : memref<64x32xf32, #tpu.memory_space<vmem>>, vector<8x32xf32>
    tpu.vector_store %arg14[%34, %c0_17], %33 {strides = array<i32>} : memref<64x32xf32, #tpu.memory_space<vmem>>, vector<8x32xf32>,
    %c1_i32 = arith.constant 1 : i32
    %c8_i32_18 = arith.constant 8 : i32
    %36 = arith.muli %c1_i32, %c8_i32_18 : i32
    %37 = tpu.assume_multiple %36, 8 : i32
    %38 = arith.index_cast %37 : i32 to index
    %c0_19 = arith.constant 0 : index
    %39 = vector.load %arg13[%38, %c0_19] : memref<64x128xf32, #tpu.memory_space<vmem>>, vector<8x128xf32>
    %cst_20 = arith.constant dense<0.000000e+00> : vector<8x128xf32>
    %40 = tpu.matmul %33, %8, %cst_20 {dimension_numbers = #tpu.dot_dimension_numbers<[1], [0], [0], [1], [0, 0, 1, 1], [], []>} : vector<8x32xf32>, vector<32x128xf32>, vector<8x128xf32> -> vector<8x128xf32>
    %41 = arith.addf %39, %40 : vector<8x128xf32>
    %cst_21 = arith.constant 5.000000e-01 : f32
    %42 = vector.broadcast %cst_21 : f32 to vector<8x128xf32>
    %43 = arith.mulf %42, %41 : vector<8x128xf32>
    %44 = math.tanh %43 : vector<8x128xf32>
    %cst_22 = arith.constant 5.000000e-01 : f32
    %45 = vector.broadcast %cst_22 : f32 to vector<8x128xf32>
    %46 = arith.mulf %45, %44 : vector<8x128xf32>
    %cst_23 = arith.constant 5.000000e-01 : f32
    %47 = vector.broadcast %cst_23 : f32 to vector<8x128xf32>
    %48 = arith.addf %46, %47 : vector<8x128xf32>
    %49 = math.tanh %41 : vector<8x128xf32>
    %50 = vector.extract_strided_slice %48 {offsets = [0, 0], sizes = [8, 32], strides = [1, 1]} : vector<8x128xf32> to vector<8x32xf32>
    %51 = vector.extract_strided_slice %48 {offsets = [0, 32], sizes = [8, 32], strides = [1, 1]} : vector<8x128xf32> to vector<8x32xf32>
    %52 = vector.extract_strided_slice %49 {offsets = [0, 64], sizes = [8, 32], strides = [1, 1]} : vector<8x128xf32> to vector<8x32xf32>
    %53 = vector.extract_strided_slice %48 {offsets = [0, 96], sizes = [8, 32], strides = [1, 1]} : vector<8x128xf32> to vector<8x32xf32>
    %54 = arith.mulf %51, %31 : vector<8x32xf32>
    %55 = arith.mulf %50, %52 : vector<8x32xf32>
    %56 = arith.addf %54, %55 : vector<8x32xf32>
    %57 = math.tanh %56 : vector<8x32xf32>
    %58 = arith.mulf %53, %57 : vector<8x32xf32>
    %59 = arith.index_cast %37 : i32 to index
    %c0_24 = arith.constant 0 : index
    %60 = vector.load %arg14[%59, %c0_24] : memref<64x32xf32, #tpu.memory_space<vmem>>, vector<8x32xf32>
    tpu.vector_store %arg14[%59, %c0_24], %58 {strides = array<i32>} : memref<64x32xf32, #tpu.memory_space<vmem>>, vector<8x32xf32>,
    %c2_i32 = arith.constant 2 : i32
    %c8_i32_25 = arith.constant 8 : i32
    %61 = arith.muli %c2_i32, %c8_i32_25 : i32
    %62 = tpu.assume_multiple %61, 8 : i32
    %63 = arith.index_cast %62 : i32 to index
    %c0_26 = arith.constant 0 : index
    %64 = vector.load %arg13[%63, %c0_26] : memref<64x128xf32, #tpu.memory_space<vmem>>, vector<8x128xf32>
    %cst_27 = arith.constant dense<0.000000e+00> : vector<8x128xf32>
    %65 = tpu.matmul %58, %8, %cst_27 {dimension_numbers = #tpu.dot_dimension_numbers<[1], [0], [0], [1], [0, 0, 1, 1], [], []>} : vector<8x32xf32>, vector<32x128xf32>, vector<8x128xf32> -> vector<8x128xf32>
    %66 = arith.addf %64, %65 : vector<8x128xf32>
    %cst_28 = arith.constant 5.000000e-01 : f32
    %67 = vector.broadcast %cst_28 : f32 to vector<8x128xf32>
    %68 = arith.mulf %67, %66 : vector<8x128xf32>
    %69 = math.tanh %68 : vector<8x128xf32>
    %cst_29 = arith.constant 5.000000e-01 : f32
    %70 = vector.broadcast %cst_29 : f32 to vector<8x128xf32>
    %71 = arith.mulf %70, %69 : vector<8x128xf32>
    %cst_30 = arith.constant 5.000000e-01 : f32
    %72 = vector.broadcast %cst_30 : f32 to vector<8x128xf32>
    %73 = arith.addf %71, %72 : vector<8x128xf32>
    %74 = math.tanh %66 : vector<8x128xf32>
    %75 = vector.extract_strided_slice %73 {offsets = [0, 0], sizes = [8, 32], strides = [1, 1]} : vector<8x128xf32> to vector<8x32xf32>
    %76 = vector.extract_strided_slice %73 {offsets = [0, 32], sizes = [8, 32], strides = [1, 1]} : vector<8x128xf32> to vector<8x32xf32>
    %77 = vector.extract_strided_slice %74 {offsets = [0, 64], sizes = [8, 32], strides = [1, 1]} : vector<8x128xf32> to vector<8x32xf32>
    %78 = vector.extract_strided_slice %73 {offsets = [0, 96], sizes = [8, 32], strides = [1, 1]} : vector<8x128xf32> to vector<8x32xf32>
    %79 = arith.mulf %76, %56 : vector<8x32xf32>
    %80 = arith.mulf %75, %77 : vector<8x32xf32>
    %81 = arith.addf %79, %80 : vector<8x32xf32>
    %82 = math.tanh %81 : vector<8x32xf32>
    %83 = arith.mulf %78, %82 : vector<8x32xf32>
    %84 = arith.index_cast %62 : i32 to index
    %c0_31 = arith.constant 0 : index
    %85 = vector.load %arg14[%84, %c0_31] : memref<64x32xf32, #tpu.memory_space<vmem>>, vector<8x32xf32>
    tpu.vector_store %arg14[%84, %c0_31], %83 {strides = array<i32>} : memref<64x32xf32, #tpu.memory_space<vmem>>, vector<8x32xf32>,
    %c3_i32 = arith.constant 3 : i32
    %c8_i32_32 = arith.constant 8 : i32
    %86 = arith.muli %c3_i32, %c8_i32_32 : i32
    %87 = tpu.assume_multiple %86, 8 : i32
    %88 = arith.index_cast %87 : i32 to index
    %c0_33 = arith.constant 0 : index
    %89 = vector.load %arg13[%88, %c0_33] : memref<64x128xf32, #tpu.memory_space<vmem>>, vector<8x128xf32>
    %cst_34 = arith.constant dense<0.000000e+00> : vector<8x128xf32>
    %90 = tpu.matmul %83, %8, %cst_34 {dimension_numbers = #tpu.dot_dimension_numbers<[1], [0], [0], [1], [0, 0, 1, 1], [], []>} : vector<8x32xf32>, vector<32x128xf32>, vector<8x128xf32> -> vector<8x128xf32>
    %91 = arith.addf %89, %90 : vector<8x128xf32>
    %cst_35 = arith.constant 5.000000e-01 : f32
    %92 = vector.broadcast %cst_35 : f32 to vector<8x128xf32>
    %93 = arith.mulf %92, %91 : vector<8x128xf32>
    %94 = math.tanh %93 : vector<8x128xf32>
    %cst_36 = arith.constant 5.000000e-01 : f32
    %95 = vector.broadcast %cst_36 : f32 to vector<8x128xf32>
    %96 = arith.mulf %95, %94 : vector<8x128xf32>
    %cst_37 = arith.constant 5.000000e-01 : f32
    %97 = vector.broadcast %cst_37 : f32 to vector<8x128xf32>
    %98 = arith.addf %96, %97 : vector<8x128xf32>
    %99 = math.tanh %91 : vector<8x128xf32>
    %100 = vector.extract_strided_slice %98 {offsets = [0, 0], sizes = [8, 32], strides = [1, 1]} : vector<8x128xf32> to vector<8x32xf32>
    %101 = vector.extract_strided_slice %98 {offsets = [0, 32], sizes = [8, 32], strides = [1, 1]} : vector<8x128xf32> to vector<8x32xf32>
    %102 = vector.extract_strided_slice %99 {offsets = [0, 64], sizes = [8, 32], strides = [1, 1]} : vector<8x128xf32> to vector<8x32xf32>
    %103 = vector.extract_strided_slice %98 {offsets = [0, 96], sizes = [8, 32], strides = [1, 1]} : vector<8x128xf32> to vector<8x32xf32>
    %104 = arith.mulf %101, %81 : vector<8x32xf32>
    %105 = arith.mulf %100, %102 : vector<8x32xf32>
    %106 = arith.addf %104, %105 : vector<8x32xf32>
    %107 = math.tanh %106 : vector<8x32xf32>
    %108 = arith.mulf %103, %107 : vector<8x32xf32>
    %109 = arith.index_cast %87 : i32 to index
    %c0_38 = arith.constant 0 : index
    %110 = vector.load %arg14[%109, %c0_38] : memref<64x32xf32, #tpu.memory_space<vmem>>, vector<8x32xf32>
    tpu.vector_store %arg14[%109, %c0_38], %108 {strides = array<i32>} : memref<64x32xf32, #tpu.memory_space<vmem>>, vector<8x32xf32>,
    %c4_i32 = arith.constant 4 : i32
    %c8_i32_39 = arith.constant 8 : i32
    %111 = arith.muli %c4_i32, %c8_i32_39 : i32
    %112 = tpu.assume_multiple %111, 8 : i32
    %113 = arith.index_cast %112 : i32 to index
    %c0_40 = arith.constant 0 : index
    %114 = vector.load %arg13[%113, %c0_40] : memref<64x128xf32, #tpu.memory_space<vmem>>, vector<8x128xf32>
    %cst_41 = arith.constant dense<0.000000e+00> : vector<8x128xf32>
    %115 = tpu.matmul %108, %8, %cst_41 {dimension_numbers = #tpu.dot_dimension_numbers<[1], [0], [0], [1], [0, 0, 1, 1], [], []>} : vector<8x32xf32>, vector<32x128xf32>, vector<8x128xf32> -> vector<8x128xf32>
    %116 = arith.addf %114, %115 : vector<8x128xf32>
    %cst_42 = arith.constant 5.000000e-01 : f32
    %117 = vector.broadcast %cst_42 : f32 to vector<8x128xf32>
    %118 = arith.mulf %117, %116 : vector<8x128xf32>
    %119 = math.tanh %118 : vector<8x128xf32>
    %cst_43 = arith.constant 5.000000e-01 : f32
    %120 = vector.broadcast %cst_43 : f32 to vector<8x128xf32>
    %121 = arith.mulf %120, %119 : vector<8x128xf32>
    %cst_44 = arith.constant 5.000000e-01 : f32
    %122 = vector.broadcast %cst_44 : f32 to vector<8x128xf32>
    %123 = arith.addf %121, %122 : vector<8x128xf32>
    %124 = math.tanh %116 : vector<8x128xf32>
    %125 = vector.extract_strided_slice %123 {offsets = [0, 0], sizes = [8, 32], strides = [1, 1]} : vector<8x128xf32> to vector<8x32xf32>
    %126 = vector.extract_strided_slice %123 {offsets = [0, 32], sizes = [8, 32], strides = [1, 1]} : vector<8x128xf32> to vector<8x32xf32>
    %127 = vector.extract_strided_slice %124 {offsets = [0, 64], sizes = [8, 32], strides = [1, 1]} : vector<8x128xf32> to vector<8x32xf32>
    %128 = vector.extract_strided_slice %123 {offsets = [0, 96], sizes = [8, 32], strides = [1, 1]} : vector<8x128xf32> to vector<8x32xf32>
    %129 = arith.mulf %126, %106 : vector<8x32xf32>
    %130 = arith.mulf %125, %127 : vector<8x32xf32>
    %131 = arith.addf %129, %130 : vector<8x32xf32>
    %132 = math.tanh %131 : vector<8x32xf32>
    %133 = arith.mulf %128, %132 : vector<8x32xf32>
    %134 = arith.index_cast %112 : i32 to index
    %c0_45 = arith.constant 0 : index
    %135 = vector.load %arg14[%134, %c0_45] : memref<64x32xf32, #tpu.memory_space<vmem>>, vector<8x32xf32>
    tpu.vector_store %arg14[%134, %c0_45], %133 {strides = array<i32>} : memref<64x32xf32, #tpu.memory_space<vmem>>, vector<8x32xf32>,
    %c5_i32 = arith.constant 5 : i32
    %c8_i32_46 = arith.constant 8 : i32
    %136 = arith.muli %c5_i32, %c8_i32_46 : i32
    %137 = tpu.assume_multiple %136, 8 : i32
    %138 = arith.index_cast %137 : i32 to index
    %c0_47 = arith.constant 0 : index
    %139 = vector.load %arg13[%138, %c0_47] : memref<64x128xf32, #tpu.memory_space<vmem>>, vector<8x128xf32>
    %cst_48 = arith.constant dense<0.000000e+00> : vector<8x128xf32>
    %140 = tpu.matmul %133, %8, %cst_48 {dimension_numbers = #tpu.dot_dimension_numbers<[1], [0], [0], [1], [0, 0, 1, 1], [], []>} : vector<8x32xf32>, vector<32x128xf32>, vector<8x128xf32> -> vector<8x128xf32>
    %141 = arith.addf %139, %140 : vector<8x128xf32>
    %cst_49 = arith.constant 5.000000e-01 : f32
    %142 = vector.broadcast %cst_49 : f32 to vector<8x128xf32>
    %143 = arith.mulf %142, %141 : vector<8x128xf32>
    %144 = math.tanh %143 : vector<8x128xf32>
    %cst_50 = arith.constant 5.000000e-01 : f32
    %145 = vector.broadcast %cst_50 : f32 to vector<8x128xf32>
    %146 = arith.mulf %145, %144 : vector<8x128xf32>
    %cst_51 = arith.constant 5.000000e-01 : f32
    %147 = vector.broadcast %cst_51 : f32 to vector<8x128xf32>
    %148 = arith.addf %146, %147 : vector<8x128xf32>
    %149 = math.tanh %141 : vector<8x128xf32>
    %150 = vector.extract_strided_slice %148 {offsets = [0, 0], sizes = [8, 32], strides = [1, 1]} : vector<8x128xf32> to vector<8x32xf32>
    %151 = vector.extract_strided_slice %148 {offsets = [0, 32], sizes = [8, 32], strides = [1, 1]} : vector<8x128xf32> to vector<8x32xf32>
    %152 = vector.extract_strided_slice %149 {offsets = [0, 64], sizes = [8, 32], strides = [1, 1]} : vector<8x128xf32> to vector<8x32xf32>
    %153 = vector.extract_strided_slice %148 {offsets = [0, 96], sizes = [8, 32], strides = [1, 1]} : vector<8x128xf32> to vector<8x32xf32>
    %154 = arith.mulf %151, %131 : vector<8x32xf32>
    %155 = arith.mulf %150, %152 : vector<8x32xf32>
    %156 = arith.addf %154, %155 : vector<8x32xf32>
    %157 = math.tanh %156 : vector<8x32xf32>
    %158 = arith.mulf %153, %157 : vector<8x32xf32>
    %159 = arith.index_cast %137 : i32 to index
    %c0_52 = arith.constant 0 : index
    %160 = vector.load %arg14[%159, %c0_52] : memref<64x32xf32, #tpu.memory_space<vmem>>, vector<8x32xf32>
    tpu.vector_store %arg14[%159, %c0_52], %158 {strides = array<i32>} : memref<64x32xf32, #tpu.memory_space<vmem>>, vector<8x32xf32>,
    %c6_i32 = arith.constant 6 : i32
    %c8_i32_53 = arith.constant 8 : i32
    %161 = arith.muli %c6_i32, %c8_i32_53 : i32
    %162 = tpu.assume_multiple %161, 8 : i32
    %163 = arith.index_cast %162 : i32 to index
    %c0_54 = arith.constant 0 : index
    %164 = vector.load %arg13[%163, %c0_54] : memref<64x128xf32, #tpu.memory_space<vmem>>, vector<8x128xf32>
    %cst_55 = arith.constant dense<0.000000e+00> : vector<8x128xf32>
    %165 = tpu.matmul %158, %8, %cst_55 {dimension_numbers = #tpu.dot_dimension_numbers<[1], [0], [0], [1], [0, 0, 1, 1], [], []>} : vector<8x32xf32>, vector<32x128xf32>, vector<8x128xf32> -> vector<8x128xf32>
    %166 = arith.addf %164, %165 : vector<8x128xf32>
    %cst_56 = arith.constant 5.000000e-01 : f32
    %167 = vector.broadcast %cst_56 : f32 to vector<8x128xf32>
    %168 = arith.mulf %167, %166 : vector<8x128xf32>
    %169 = math.tanh %168 : vector<8x128xf32>
    %cst_57 = arith.constant 5.000000e-01 : f32
    %170 = vector.broadcast %cst_57 : f32 to vector<8x128xf32>
    %171 = arith.mulf %170, %169 : vector<8x128xf32>
    %cst_58 = arith.constant 5.000000e-01 : f32
    %172 = vector.broadcast %cst_58 : f32 to vector<8x128xf32>
    %173 = arith.addf %171, %172 : vector<8x128xf32>
    %174 = math.tanh %166 : vector<8x128xf32>
    %175 = vector.extract_strided_slice %173 {offsets = [0, 0], sizes = [8, 32], strides = [1, 1]} : vector<8x128xf32> to vector<8x32xf32>
    %176 = vector.extract_strided_slice %173 {offsets = [0, 32], sizes = [8, 32], strides = [1, 1]} : vector<8x128xf32> to vector<8x32xf32>
    %177 = vector.extract_strided_slice %174 {offsets = [0, 64], sizes = [8, 32], strides = [1, 1]} : vector<8x128xf32> to vector<8x32xf32>
    %178 = vector.extract_strided_slice %173 {offsets = [0, 96], sizes = [8, 32], strides = [1, 1]} : vector<8x128xf32> to vector<8x32xf32>
    %179 = arith.mulf %176, %156 : vector<8x32xf32>
    %180 = arith.mulf %175, %177 : vector<8x32xf32>
    %181 = arith.addf %179, %180 : vector<8x32xf32>
    %182 = math.tanh %181 : vector<8x32xf32>
    %183 = arith.mulf %178, %182 : vector<8x32xf32>
    %184 = arith.index_cast %162 : i32 to index
    %c0_59 = arith.constant 0 : index
    %185 = vector.load %arg14[%184, %c0_59] : memref<64x32xf32, #tpu.memory_space<vmem>>, vector<8x32xf32>
    tpu.vector_store %arg14[%184, %c0_59], %183 {strides = array<i32>} : memref<64x32xf32, #tpu.memory_space<vmem>>, vector<8x32xf32>,
    %c7_i32 = arith.constant 7 : i32
    %c8_i32_60 = arith.constant 8 : i32
    %186 = arith.muli %c7_i32, %c8_i32_60 : i32
    %187 = tpu.assume_multiple %186, 8 : i32
    %188 = arith.index_cast %187 : i32 to index
    %c0_61 = arith.constant 0 : index
    %189 = vector.load %arg13[%188, %c0_61] : memref<64x128xf32, #tpu.memory_space<vmem>>, vector<8x128xf32>
    %cst_62 = arith.constant dense<0.000000e+00> : vector<8x128xf32>
    %190 = tpu.matmul %183, %8, %cst_62 {dimension_numbers = #tpu.dot_dimension_numbers<[1], [0], [0], [1], [0, 0, 1, 1], [], []>} : vector<8x32xf32>, vector<32x128xf32>, vector<8x128xf32> -> vector<8x128xf32>
    %191 = arith.addf %189, %190 : vector<8x128xf32>
    %cst_63 = arith.constant 5.000000e-01 : f32
    %192 = vector.broadcast %cst_63 : f32 to vector<8x128xf32>
    %193 = arith.mulf %192, %191 : vector<8x128xf32>
    %194 = math.tanh %193 : vector<8x128xf32>
    %cst_64 = arith.constant 5.000000e-01 : f32
    %195 = vector.broadcast %cst_64 : f32 to vector<8x128xf32>
    %196 = arith.mulf %195, %194 : vector<8x128xf32>
    %cst_65 = arith.constant 5.000000e-01 : f32
    %197 = vector.broadcast %cst_65 : f32 to vector<8x128xf32>
    %198 = arith.addf %196, %197 : vector<8x128xf32>
    %199 = math.tanh %191 : vector<8x128xf32>
    %200 = vector.extract_strided_slice %198 {offsets = [0, 0], sizes = [8, 32], strides = [1, 1]} : vector<8x128xf32> to vector<8x32xf32>
    %201 = vector.extract_strided_slice %198 {offsets = [0, 32], sizes = [8, 32], strides = [1, 1]} : vector<8x128xf32> to vector<8x32xf32>
    %202 = vector.extract_strided_slice %199 {offsets = [0, 64], sizes = [8, 32], strides = [1, 1]} : vector<8x128xf32> to vector<8x32xf32>
    %203 = vector.extract_strided_slice %198 {offsets = [0, 96], sizes = [8, 32], strides = [1, 1]} : vector<8x128xf32> to vector<8x32xf32>
    %204 = arith.mulf %201, %181 : vector<8x32xf32>
    %205 = arith.mulf %200, %202 : vector<8x32xf32>
    %206 = arith.addf %204, %205 : vector<8x32xf32>
    %207 = math.tanh %206 : vector<8x32xf32>
    %208 = arith.mulf %203, %207 : vector<8x32xf32>
    %209 = arith.index_cast %187 : i32 to index
    %c0_66 = arith.constant 0 : index
    %210 = vector.load %arg14[%209, %c0_66] : memref<64x32xf32, #tpu.memory_space<vmem>>, vector<8x32xf32>
    tpu.vector_store %arg14[%209, %c0_66], %208 {strides = array<i32>} : memref<64x32xf32, #tpu.memory_space<vmem>>, vector<8x32xf32>,
    %c8_i32_67 = arith.constant 8 : i32
    %c0_68 = arith.constant 0 : index
    %c0_69 = arith.constant 0 : index
    %211 = vector.load %arg14[%c0_68, %c0_69] : memref<64x32xf32, #tpu.memory_space<vmem>>, vector<64x32xf32>
    %c0_70 = arith.constant 0 : index
    %c0_71 = arith.constant 0 : index
    %212 = vector.load %arg5[%c0_70, %c0_71] : memref<32x128xf32, #tpu.memory_space<vmem>>, vector<32x128xf32>
    %cst_72 = arith.constant dense<0.000000e+00> : vector<64x128xf32>
    %213 = tpu.matmul %211, %212, %cst_72 {dimension_numbers = #tpu.dot_dimension_numbers<[1], [0], [0], [1], [0, 0, 1, 1], [], []>} : vector<64x32xf32>, vector<32x128xf32>, vector<64x128xf32> -> vector<64x128xf32>
    %c0_73 = arith.constant 0 : index
    %c0_74 = arith.constant 0 : index
    %214 = vector.load %arg7[%c0_73, %c0_74] : memref<1x128xf32, #tpu.memory_space<vmem>>, vector<1x128xf32>
    %215 = vector.broadcast %214 : vector<1x128xf32> to vector<64x128xf32>
    %216 = arith.addf %213, %215 : vector<64x128xf32>
    %c0_75 = arith.constant 0 : index
    %c0_76 = arith.constant 0 : index
    %217 = vector.load %arg13[%c0_75, %c0_76] : memref<64x128xf32, #tpu.memory_space<vmem>>, vector<64x128xf32>
    tpu.vector_store %arg13[%c0_75, %c0_76], %216 {strides = array<i32>} : memref<64x128xf32, #tpu.memory_space<vmem>>, vector<64x128xf32>,
    %c0_77 = arith.constant 0 : index
    %c0_78 = arith.constant 0 : index
    %218 = vector.load %arg6[%c0_77, %c0_78] : memref<32x128xf32, #tpu.memory_space<vmem>>, vector<32x128xf32>
    %cst_79 = arith.constant 0.000000e+00 : f32
    %219 = vector.broadcast %cst_79 : f32 to vector<8x32xf32>
    %cst_80 = arith.constant 0.000000e+00 : f32
    %220 = vector.broadcast %cst_80 : f32 to vector<8x32xf32>
    %c0_i32_81 = arith.constant 0 : i32
    %c8_i32_82 = arith.constant 8 : i32
    %221 = arith.muli %c0_i32_81, %c8_i32_82 : i32
    %222 = tpu.assume_multiple %221, 8 : i32
    %223 = arith.index_cast %222 : i32 to index
    %c0_83 = arith.constant 0 : index
    %224 = vector.load %arg13[%223, %c0_83] : memref<64x128xf32, #tpu.memory_space<vmem>>, vector<8x128xf32>
    %cst_84 = arith.constant dense<0.000000e+00> : vector<8x128xf32>
    %225 = tpu.matmul %219, %218, %cst_84 {dimension_numbers = #tpu.dot_dimension_numbers<[1], [0], [0], [1], [0, 0, 1, 1], [], []>} : vector<8x32xf32>, vector<32x128xf32>, vector<8x128xf32> -> vector<8x128xf32>
    %226 = arith.addf %224, %225 : vector<8x128xf32>
    %cst_85 = arith.constant 5.000000e-01 : f32
    %227 = vector.broadcast %cst_85 : f32 to vector<8x128xf32>
    %228 = arith.mulf %227, %226 : vector<8x128xf32>
    %229 = math.tanh %228 : vector<8x128xf32>
    %cst_86 = arith.constant 5.000000e-01 : f32
    %230 = vector.broadcast %cst_86 : f32 to vector<8x128xf32>
    %231 = arith.mulf %230, %229 : vector<8x128xf32>
    %cst_87 = arith.constant 5.000000e-01 : f32
    %232 = vector.broadcast %cst_87 : f32 to vector<8x128xf32>
    %233 = arith.addf %231, %232 : vector<8x128xf32>
    %234 = math.tanh %226 : vector<8x128xf32>
    %235 = vector.extract_strided_slice %233 {offsets = [0, 0], sizes = [8, 32], strides = [1, 1]} : vector<8x128xf32> to vector<8x32xf32>
    %236 = vector.extract_strided_slice %233 {offsets = [0, 32], sizes = [8, 32], strides = [1, 1]} : vector<8x128xf32> to vector<8x32xf32>
    %237 = vector.extract_strided_slice %234 {offsets = [0, 64], sizes = [8, 32], strides = [1, 1]} : vector<8x128xf32> to vector<8x32xf32>
    %238 = vector.extract_strided_slice %233 {offsets = [0, 96], sizes = [8, 32], strides = [1, 1]} : vector<8x128xf32> to vector<8x32xf32>
    %239 = arith.mulf %236, %220 : vector<8x32xf32>
    %240 = arith.mulf %235, %237 : vector<8x32xf32>
    %241 = arith.addf %239, %240 : vector<8x32xf32>
    %242 = math.tanh %241 : vector<8x32xf32>
    %243 = arith.mulf %238, %242 : vector<8x32xf32>
    %c1_i32_88 = arith.constant 1 : i32
    %c8_i32_89 = arith.constant 8 : i32
    %244 = arith.muli %c1_i32_88, %c8_i32_89 : i32
    %245 = tpu.assume_multiple %244, 8 : i32
    %246 = arith.index_cast %245 : i32 to index
    %c0_90 = arith.constant 0 : index
    %247 = vector.load %arg13[%246, %c0_90] : memref<64x128xf32, #tpu.memory_space<vmem>>, vector<8x128xf32>
    %cst_91 = arith.constant dense<0.000000e+00> : vector<8x128xf32>
    %248 = tpu.matmul %243, %218, %cst_91 {dimension_numbers = #tpu.dot_dimension_numbers<[1], [0], [0], [1], [0, 0, 1, 1], [], []>} : vector<8x32xf32>, vector<32x128xf32>, vector<8x128xf32> -> vector<8x128xf32>
    %249 = arith.addf %247, %248 : vector<8x128xf32>
    %cst_92 = arith.constant 5.000000e-01 : f32
    %250 = vector.broadcast %cst_92 : f32 to vector<8x128xf32>
    %251 = arith.mulf %250, %249 : vector<8x128xf32>
    %252 = math.tanh %251 : vector<8x128xf32>
    %cst_93 = arith.constant 5.000000e-01 : f32
    %253 = vector.broadcast %cst_93 : f32 to vector<8x128xf32>
    %254 = arith.mulf %253, %252 : vector<8x128xf32>
    %cst_94 = arith.constant 5.000000e-01 : f32
    %255 = vector.broadcast %cst_94 : f32 to vector<8x128xf32>
    %256 = arith.addf %254, %255 : vector<8x128xf32>
    %257 = math.tanh %249 : vector<8x128xf32>
    %258 = vector.extract_strided_slice %256 {offsets = [0, 0], sizes = [8, 32], strides = [1, 1]} : vector<8x128xf32> to vector<8x32xf32>
    %259 = vector.extract_strided_slice %256 {offsets = [0, 32], sizes = [8, 32], strides = [1, 1]} : vector<8x128xf32> to vector<8x32xf32>
    %260 = vector.extract_strided_slice %257 {offsets = [0, 64], sizes = [8, 32], strides = [1, 1]} : vector<8x128xf32> to vector<8x32xf32>
    %261 = vector.extract_strided_slice %256 {offsets = [0, 96], sizes = [8, 32], strides = [1, 1]} : vector<8x128xf32> to vector<8x32xf32>
    %262 = arith.mulf %259, %241 : vector<8x32xf32>
    %263 = arith.mulf %258, %260 : vector<8x32xf32>
    %264 = arith.addf %262, %263 : vector<8x32xf32>
    %265 = math.tanh %264 : vector<8x32xf32>
    %266 = arith.mulf %261, %265 : vector<8x32xf32>
    %c2_i32_95 = arith.constant 2 : i32
    %c8_i32_96 = arith.constant 8 : i32
    %267 = arith.muli %c2_i32_95, %c8_i32_96 : i32
    %268 = tpu.assume_multiple %267, 8 : i32
    %269 = arith.index_cast %268 : i32 to index
    %c0_97 = arith.constant 0 : index
    %270 = vector.load %arg13[%269, %c0_97] : memref<64x128xf32, #tpu.memory_space<vmem>>, vector<8x128xf32>
    %cst_98 = arith.constant dense<0.000000e+00> : vector<8x128xf32>
    %271 = tpu.matmul %266, %218, %cst_98 {dimension_numbers = #tpu.dot_dimension_numbers<[1], [0], [0], [1], [0, 0, 1, 1], [], []>} : vector<8x32xf32>, vector<32x128xf32>, vector<8x128xf32> -> vector<8x128xf32>
    %272 = arith.addf %270, %271 : vector<8x128xf32>
    %cst_99 = arith.constant 5.000000e-01 : f32
    %273 = vector.broadcast %cst_99 : f32 to vector<8x128xf32>
    %274 = arith.mulf %273, %272 : vector<8x128xf32>
    %275 = math.tanh %274 : vector<8x128xf32>
    %cst_100 = arith.constant 5.000000e-01 : f32
    %276 = vector.broadcast %cst_100 : f32 to vector<8x128xf32>
    %277 = arith.mulf %276, %275 : vector<8x128xf32>
    %cst_101 = arith.constant 5.000000e-01 : f32
    %278 = vector.broadcast %cst_101 : f32 to vector<8x128xf32>
    %279 = arith.addf %277, %278 : vector<8x128xf32>
    %280 = math.tanh %272 : vector<8x128xf32>
    %281 = vector.extract_strided_slice %279 {offsets = [0, 0], sizes = [8, 32], strides = [1, 1]} : vector<8x128xf32> to vector<8x32xf32>
    %282 = vector.extract_strided_slice %279 {offsets = [0, 32], sizes = [8, 32], strides = [1, 1]} : vector<8x128xf32> to vector<8x32xf32>
    %283 = vector.extract_strided_slice %280 {offsets = [0, 64], sizes = [8, 32], strides = [1, 1]} : vector<8x128xf32> to vector<8x32xf32>
    %284 = vector.extract_strided_slice %279 {offsets = [0, 96], sizes = [8, 32], strides = [1, 1]} : vector<8x128xf32> to vector<8x32xf32>
    %285 = arith.mulf %282, %264 : vector<8x32xf32>
    %286 = arith.mulf %281, %283 : vector<8x32xf32>
    %287 = arith.addf %285, %286 : vector<8x32xf32>
    %288 = math.tanh %287 : vector<8x32xf32>
    %289 = arith.mulf %284, %288 : vector<8x32xf32>
    %c3_i32_102 = arith.constant 3 : i32
    %c8_i32_103 = arith.constant 8 : i32
    %290 = arith.muli %c3_i32_102, %c8_i32_103 : i32
    %291 = tpu.assume_multiple %290, 8 : i32
    %292 = arith.index_cast %291 : i32 to index
    %c0_104 = arith.constant 0 : index
    %293 = vector.load %arg13[%292, %c0_104] : memref<64x128xf32, #tpu.memory_space<vmem>>, vector<8x128xf32>
    %cst_105 = arith.constant dense<0.000000e+00> : vector<8x128xf32>
    %294 = tpu.matmul %289, %218, %cst_105 {dimension_numbers = #tpu.dot_dimension_numbers<[1], [0], [0], [1], [0, 0, 1, 1], [], []>} : vector<8x32xf32>, vector<32x128xf32>, vector<8x128xf32> -> vector<8x128xf32>
    %295 = arith.addf %293, %294 : vector<8x128xf32>
    %cst_106 = arith.constant 5.000000e-01 : f32
    %296 = vector.broadcast %cst_106 : f32 to vector<8x128xf32>
    %297 = arith.mulf %296, %295 : vector<8x128xf32>
    %298 = math.tanh %297 : vector<8x128xf32>
    %cst_107 = arith.constant 5.000000e-01 : f32
    %299 = vector.broadcast %cst_107 : f32 to vector<8x128xf32>
    %300 = arith.mulf %299, %298 : vector<8x128xf32>
    %cst_108 = arith.constant 5.000000e-01 : f32
    %301 = vector.broadcast %cst_108 : f32 to vector<8x128xf32>
    %302 = arith.addf %300, %301 : vector<8x128xf32>
    %303 = math.tanh %295 : vector<8x128xf32>
    %304 = vector.extract_strided_slice %302 {offsets = [0, 0], sizes = [8, 32], strides = [1, 1]} : vector<8x128xf32> to vector<8x32xf32>
    %305 = vector.extract_strided_slice %302 {offsets = [0, 32], sizes = [8, 32], strides = [1, 1]} : vector<8x128xf32> to vector<8x32xf32>
    %306 = vector.extract_strided_slice %303 {offsets = [0, 64], sizes = [8, 32], strides = [1, 1]} : vector<8x128xf32> to vector<8x32xf32>
    %307 = vector.extract_strided_slice %302 {offsets = [0, 96], sizes = [8, 32], strides = [1, 1]} : vector<8x128xf32> to vector<8x32xf32>
    %308 = arith.mulf %305, %287 : vector<8x32xf32>
    %309 = arith.mulf %304, %306 : vector<8x32xf32>
    %310 = arith.addf %308, %309 : vector<8x32xf32>
    %311 = math.tanh %310 : vector<8x32xf32>
    %312 = arith.mulf %307, %311 : vector<8x32xf32>
    %c4_i32_109 = arith.constant 4 : i32
    %c8_i32_110 = arith.constant 8 : i32
    %313 = arith.muli %c4_i32_109, %c8_i32_110 : i32
    %314 = tpu.assume_multiple %313, 8 : i32
    %315 = arith.index_cast %314 : i32 to index
    %c0_111 = arith.constant 0 : index
    %316 = vector.load %arg13[%315, %c0_111] : memref<64x128xf32, #tpu.memory_space<vmem>>, vector<8x128xf32>
    %cst_112 = arith.constant dense<0.000000e+00> : vector<8x128xf32>
    %317 = tpu.matmul %312, %218, %cst_112 {dimension_numbers = #tpu.dot_dimension_numbers<[1], [0], [0], [1], [0, 0, 1, 1], [], []>} : vector<8x32xf32>, vector<32x128xf32>, vector<8x128xf32> -> vector<8x128xf32>
    %318 = arith.addf %316, %317 : vector<8x128xf32>
    %cst_113 = arith.constant 5.000000e-01 : f32
    %319 = vector.broadcast %cst_113 : f32 to vector<8x128xf32>
    %320 = arith.mulf %319, %318 : vector<8x128xf32>
    %321 = math.tanh %320 : vector<8x128xf32>
    %cst_114 = arith.constant 5.000000e-01 : f32
    %322 = vector.broadcast %cst_114 : f32 to vector<8x128xf32>
    %323 = arith.mulf %322, %321 : vector<8x128xf32>
    %cst_115 = arith.constant 5.000000e-01 : f32
    %324 = vector.broadcast %cst_115 : f32 to vector<8x128xf32>
    %325 = arith.addf %323, %324 : vector<8x128xf32>
    %326 = math.tanh %318 : vector<8x128xf32>
    %327 = vector.extract_strided_slice %325 {offsets = [0, 0], sizes = [8, 32], strides = [1, 1]} : vector<8x128xf32> to vector<8x32xf32>
    %328 = vector.extract_strided_slice %325 {offsets = [0, 32], sizes = [8, 32], strides = [1, 1]} : vector<8x128xf32> to vector<8x32xf32>
    %329 = vector.extract_strided_slice %326 {offsets = [0, 64], sizes = [8, 32], strides = [1, 1]} : vector<8x128xf32> to vector<8x32xf32>
    %330 = vector.extract_strided_slice %325 {offsets = [0, 96], sizes = [8, 32], strides = [1, 1]} : vector<8x128xf32> to vector<8x32xf32>
    %331 = arith.mulf %328, %310 : vector<8x32xf32>
    %332 = arith.mulf %327, %329 : vector<8x32xf32>
    %333 = arith.addf %331, %332 : vector<8x32xf32>
    %334 = math.tanh %333 : vector<8x32xf32>
    %335 = arith.mulf %330, %334 : vector<8x32xf32>
    %c5_i32_116 = arith.constant 5 : i32
    %c8_i32_117 = arith.constant 8 : i32
    %336 = arith.muli %c5_i32_116, %c8_i32_117 : i32
    %337 = tpu.assume_multiple %336, 8 : i32
    %338 = arith.index_cast %337 : i32 to index
    %c0_118 = arith.constant 0 : index
    %339 = vector.load %arg13[%338, %c0_118] : memref<64x128xf32, #tpu.memory_space<vmem>>, vector<8x128xf32>
    %cst_119 = arith.constant dense<0.000000e+00> : vector<8x128xf32>
    %340 = tpu.matmul %335, %218, %cst_119 {dimension_numbers = #tpu.dot_dimension_numbers<[1], [0], [0], [1], [0, 0, 1, 1], [], []>} : vector<8x32xf32>, vector<32x128xf32>, vector<8x128xf32> -> vector<8x128xf32>
    %341 = arith.addf %339, %340 : vector<8x128xf32>
    %cst_120 = arith.constant 5.000000e-01 : f32
    %342 = vector.broadcast %cst_120 : f32 to vector<8x128xf32>
    %343 = arith.mulf %342, %341 : vector<8x128xf32>
    %344 = math.tanh %343 : vector<8x128xf32>
    %cst_121 = arith.constant 5.000000e-01 : f32
    %345 = vector.broadcast %cst_121 : f32 to vector<8x128xf32>
    %346 = arith.mulf %345, %344 : vector<8x128xf32>
    %cst_122 = arith.constant 5.000000e-01 : f32
    %347 = vector.broadcast %cst_122 : f32 to vector<8x128xf32>
    %348 = arith.addf %346, %347 : vector<8x128xf32>
    %349 = math.tanh %341 : vector<8x128xf32>
    %350 = vector.extract_strided_slice %348 {offsets = [0, 0], sizes = [8, 32], strides = [1, 1]} : vector<8x128xf32> to vector<8x32xf32>
    %351 = vector.extract_strided_slice %348 {offsets = [0, 32], sizes = [8, 32], strides = [1, 1]} : vector<8x128xf32> to vector<8x32xf32>
    %352 = vector.extract_strided_slice %349 {offsets = [0, 64], sizes = [8, 32], strides = [1, 1]} : vector<8x128xf32> to vector<8x32xf32>
    %353 = vector.extract_strided_slice %348 {offsets = [0, 96], sizes = [8, 32], strides = [1, 1]} : vector<8x128xf32> to vector<8x32xf32>
    %354 = arith.mulf %351, %333 : vector<8x32xf32>
    %355 = arith.mulf %350, %352 : vector<8x32xf32>
    %356 = arith.addf %354, %355 : vector<8x32xf32>
    %357 = math.tanh %356 : vector<8x32xf32>
    %358 = arith.mulf %353, %357 : vector<8x32xf32>
    %c6_i32_123 = arith.constant 6 : i32
    %c8_i32_124 = arith.constant 8 : i32
    %359 = arith.muli %c6_i32_123, %c8_i32_124 : i32
    %360 = tpu.assume_multiple %359, 8 : i32
    %361 = arith.index_cast %360 : i32 to index
    %c0_125 = arith.constant 0 : index
    %362 = vector.load %arg13[%361, %c0_125] : memref<64x128xf32, #tpu.memory_space<vmem>>, vector<8x128xf32>
    %cst_126 = arith.constant dense<0.000000e+00> : vector<8x128xf32>
    %363 = tpu.matmul %358, %218, %cst_126 {dimension_numbers = #tpu.dot_dimension_numbers<[1], [0], [0], [1], [0, 0, 1, 1], [], []>} : vector<8x32xf32>, vector<32x128xf32>, vector<8x128xf32> -> vector<8x128xf32>
    %364 = arith.addf %362, %363 : vector<8x128xf32>
    %cst_127 = arith.constant 5.000000e-01 : f32
    %365 = vector.broadcast %cst_127 : f32 to vector<8x128xf32>
    %366 = arith.mulf %365, %364 : vector<8x128xf32>
    %367 = math.tanh %366 : vector<8x128xf32>
    %cst_128 = arith.constant 5.000000e-01 : f32
    %368 = vector.broadcast %cst_128 : f32 to vector<8x128xf32>
    %369 = arith.mulf %368, %367 : vector<8x128xf32>
    %cst_129 = arith.constant 5.000000e-01 : f32
    %370 = vector.broadcast %cst_129 : f32 to vector<8x128xf32>
    %371 = arith.addf %369, %370 : vector<8x128xf32>
    %372 = math.tanh %364 : vector<8x128xf32>
    %373 = vector.extract_strided_slice %371 {offsets = [0, 0], sizes = [8, 32], strides = [1, 1]} : vector<8x128xf32> to vector<8x32xf32>
    %374 = vector.extract_strided_slice %371 {offsets = [0, 32], sizes = [8, 32], strides = [1, 1]} : vector<8x128xf32> to vector<8x32xf32>
    %375 = vector.extract_strided_slice %372 {offsets = [0, 64], sizes = [8, 32], strides = [1, 1]} : vector<8x128xf32> to vector<8x32xf32>
    %376 = vector.extract_strided_slice %371 {offsets = [0, 96], sizes = [8, 32], strides = [1, 1]} : vector<8x128xf32> to vector<8x32xf32>
    %377 = arith.mulf %374, %356 : vector<8x32xf32>
    %378 = arith.mulf %373, %375 : vector<8x32xf32>
    %379 = arith.addf %377, %378 : vector<8x32xf32>
    %380 = math.tanh %379 : vector<8x32xf32>
    %381 = arith.mulf %376, %380 : vector<8x32xf32>
    %c7_i32_130 = arith.constant 7 : i32
    %c8_i32_131 = arith.constant 8 : i32
    %382 = arith.muli %c7_i32_130, %c8_i32_131 : i32
    %383 = tpu.assume_multiple %382, 8 : i32
    %384 = arith.index_cast %383 : i32 to index
    %c0_132 = arith.constant 0 : index
    %385 = vector.load %arg13[%384, %c0_132] : memref<64x128xf32, #tpu.memory_space<vmem>>, vector<8x128xf32>
    %cst_133 = arith.constant dense<0.000000e+00> : vector<8x128xf32>
    %386 = tpu.matmul %381, %218, %cst_133 {dimension_numbers = #tpu.dot_dimension_numbers<[1], [0], [0], [1], [0, 0, 1, 1], [], []>} : vector<8x32xf32>, vector<32x128xf32>, vector<8x128xf32> -> vector<8x128xf32>
    %387 = arith.addf %385, %386 : vector<8x128xf32>
    %cst_134 = arith.constant 5.000000e-01 : f32
    %388 = vector.broadcast %cst_134 : f32 to vector<8x128xf32>
    %389 = arith.mulf %388, %387 : vector<8x128xf32>
    %390 = math.tanh %389 : vector<8x128xf32>
    %cst_135 = arith.constant 5.000000e-01 : f32
    %391 = vector.broadcast %cst_135 : f32 to vector<8x128xf32>
    %392 = arith.mulf %391, %390 : vector<8x128xf32>
    %cst_136 = arith.constant 5.000000e-01 : f32
    %393 = vector.broadcast %cst_136 : f32 to vector<8x128xf32>
    %394 = arith.addf %392, %393 : vector<8x128xf32>
    %395 = math.tanh %387 : vector<8x128xf32>
    %396 = vector.extract_strided_slice %394 {offsets = [0, 0], sizes = [8, 32], strides = [1, 1]} : vector<8x128xf32> to vector<8x32xf32>
    %397 = vector.extract_strided_slice %394 {offsets = [0, 32], sizes = [8, 32], strides = [1, 1]} : vector<8x128xf32> to vector<8x32xf32>
    %398 = vector.extract_strided_slice %395 {offsets = [0, 64], sizes = [8, 32], strides = [1, 1]} : vector<8x128xf32> to vector<8x32xf32>
    %399 = vector.extract_strided_slice %394 {offsets = [0, 96], sizes = [8, 32], strides = [1, 1]} : vector<8x128xf32> to vector<8x32xf32>
    %400 = arith.mulf %397, %379 : vector<8x32xf32>
    %401 = arith.mulf %396, %398 : vector<8x32xf32>
    %402 = arith.addf %400, %401 : vector<8x32xf32>
    %403 = math.tanh %402 : vector<8x32xf32>
    %404 = arith.mulf %399, %403 : vector<8x32xf32>
    %c8_i32_137 = arith.constant 8 : i32
    %c0_138 = arith.constant 0 : index
    %c0_139 = arith.constant 0 : index
    %405 = vector.load %arg8[%c0_138, %c0_139] : memref<32x16xf32, #tpu.memory_space<vmem>>, vector<32x16xf32>
    %cst_140 = arith.constant dense<0.000000e+00> : vector<8x16xf32>
    %406 = tpu.matmul %404, %405, %cst_140 {dimension_numbers = #tpu.dot_dimension_numbers<[1], [0], [0], [1], [0, 0, 1, 1], [], []>} : vector<8x32xf32>, vector<32x16xf32>, vector<8x16xf32> -> vector<8x16xf32>
    %c0_141 = arith.constant 0 : index
    %c0_142 = arith.constant 0 : index
    %407 = vector.load %arg9[%c0_141, %c0_142] : memref<1x16xf32, #tpu.memory_space<vmem>>, vector<1x16xf32>
    %408 = vector.broadcast %407 : vector<1x16xf32> to vector<8x16xf32>
    %409 = arith.addf %406, %408 : vector<8x16xf32>
    %cst_143 = arith.constant 0.000000e+00 : f32
    %410 = vector.broadcast %cst_143 : f32 to vector<8x16xf32>
    %411 = arith.cmpf ogt, %409, %410 : vector<8x16xf32>
    %cst_144 = arith.constant 0.00999999977 : f32
    %412 = vector.broadcast %cst_144 : f32 to vector<8x16xf32>
    %413 = arith.mulf %412, %409 : vector<8x16xf32>
    %414 = arith.select %411, %409, %413 : vector<8x16xi1>, vector<8x16xf32>
    %c0_145 = arith.constant 0 : index
    %c0_146 = arith.constant 0 : index
    %415 = vector.load %arg10[%c0_145, %c0_146] : memref<1x16xf32, #tpu.memory_space<vmem>>, vector<1x16xf32>
    %416 = vector.broadcast %415 : vector<1x16xf32> to vector<8x16xf32>
    %417 = arith.mulf %414, %416 : vector<8x16xf32>
    %cst_147 = arith.constant dense<0.000000e+00> : vector<8xf32>
    %418 = vector.multi_reduction <add>, %417, %cst_147 [1] : vector<8x16xf32> to vector<8xf32>
    %419 = vector.shape_cast %418 : vector<8xf32> to vector<8x1xf32>
    %c0_148 = arith.constant 0 : index
    %c0_149 = arith.constant 0 : index
    %420 = vector.load %arg11[%c0_148, %c0_149] : memref<1x1xf32, #tpu.memory_space<vmem>>, vector<1x1xf32>
    %421 = vector.broadcast %420 : vector<1x1xf32> to vector<8x1xf32>
    %422 = arith.addf %419, %421 : vector<8x1xf32>
    %c0_150 = arith.constant 0 : index
    %c0_151 = arith.constant 0 : index
    %423 = vector.load %arg12[%c0_150, %c0_151] : memref<8x1xf32, #tpu.memory_space<vmem>>, vector<8x1xf32>
    tpu.vector_store %arg12[%c0_150, %c0_151], %422 {strides = array<i32>} : memref<8x1xf32, #tpu.memory_space<vmem>>, vector<8x1xf32>,
    return
  }
  func.func @transform_0(%arg0: i32) -> (i32, i32, i32) {
    %c0_i32 = arith.constant 0 : i32
    %c0_i32_0 = arith.constant 0 : i32
    %c0_i32_1 = arith.constant 0 : i32
    return %c0_i32, %arg0, %c0_i32_0 : i32, i32, i32
  }
  func.func @transform_1(%arg0: i32) -> (i32, i32) {
    %c0_i32 = arith.constant 0 : i32
    %c0_i32_0 = arith.constant 0 : i32
    %c0_i32_1 = arith.constant 0 : i32
    return %c0_i32, %c0_i32_0 : i32, i32
  }
  func.func @transform_2(%arg0: i32) -> (i32, i32) {
    %c0_i32 = arith.constant 0 : i32
    %c0_i32_0 = arith.constant 0 : i32
    %c0_i32_1 = arith.constant 0 : i32
    return %c0_i32, %c0_i32_0 : i32, i32
  }
  func.func @transform_3(%arg0: i32) -> (i32, i32) {
    %c0_i32 = arith.constant 0 : i32
    %c0_i32_0 = arith.constant 0 : i32
    %c0_i32_1 = arith.constant 0 : i32
    return %c0_i32, %c0_i32_0 : i32, i32
  }
  func.func @transform_4(%arg0: i32) -> (i32, i32) {
    %c0_i32 = arith.constant 0 : i32
    %c0_i32_0 = arith.constant 0 : i32
    %c0_i32_1 = arith.constant 0 : i32
    return %c0_i32, %c0_i32_0 : i32, i32
  }
  func.func @transform_5(%arg0: i32) -> (i32, i32) {
    %c0_i32 = arith.constant 0 : i32
    %c0_i32_0 = arith.constant 0 : i32
    %c0_i32_1 = arith.constant 0 : i32
    return %c0_i32, %c0_i32_0 : i32, i32
  }
  func.func @transform_6(%arg0: i32) -> (i32, i32) {
    %c0_i32 = arith.constant 0 : i32
    %c0_i32_0 = arith.constant 0 : i32
    %c0_i32_1 = arith.constant 0 : i32
    return %c0_i32, %c0_i32_0 : i32, i32
  }
  func.func @transform_7(%arg0: i32) -> (i32, i32) {
    %c0_i32 = arith.constant 0 : i32
    %c0_i32_0 = arith.constant 0 : i32
    %c0_i32_1 = arith.constant 0 : i32
    return %c0_i32, %c0_i32_0 : i32, i32
  }
  func.func @transform_8(%arg0: i32) -> (i32, i32) {
    %c0_i32 = arith.constant 0 : i32
    %c0_i32_0 = arith.constant 0 : i32
    %c0_i32_1 = arith.constant 0 : i32
    return %c0_i32, %c0_i32_0 : i32, i32
  }
  func.func @transform_9(%arg0: i32) -> (i32, i32) {
    %c0_i32 = arith.constant 0 : i32
    %c0_i32_0 = arith.constant 0 : i32
    %c0_i32_1 = arith.constant 0 : i32
    return %c0_i32, %c0_i32_0 : i32, i32
  }
  func.func @transform_10(%arg0: i32) -> (i32, i32) {
    %c0_i32 = arith.constant 0 : i32
    %c0_i32_0 = arith.constant 0 : i32
    %c0_i32_1 = arith.constant 0 : i32
    return %c0_i32, %c0_i32_0 : i32, i32
  }
  func.func @transform_11(%arg0: i32) -> (i32, i32) {
    %c0_i32 = arith.constant 0 : i32
    %c0_i32_0 = arith.constant 0 : i32
    return %arg0, %c0_i32 : i32, i32
  }
}

</mosaic_0001>

<llo_original>
// kernel: tpu_custom_call.1
$region0: #{tpu_custom_call.1}
  #allocation0 [shape = 'u32[]', space=smem, size = 0x4, offset = 0x4, fixed_abs, tag = 'smem constant byte address 0x4 - core index']
  #allocation1 [shape = 'u32[72,128]{1,0:T(1,128)}', space=vmem, size = 0x9000, scoped, tag = 'internal scratch']
  #allocation2 [shape = 'f32[64,128]{1,0:T(8,128)}', space=vmem, size = 0x8000, scoped, tag = 'scratch operand']
  #allocation3 [shape = 'f32[64,32]{1,0:T(8,128)}', space=vmem, size = 0x8000, scoped, tag = 'scratch operand']
  #allocation4 [shape = 'f32[1,1]{1,0:T(1,128)S(1)}', space=vmem, size = 0x200, scoped, tag = 'scoped memory for tpu_custom_call.1']
  %s0 = inlined_call_operand.vmem [shape: f32[8,8,4], index: 0, kind: input, shape index: {}]
  %s1 = inlined_call_operand.vmem [shape: f32[4,128], index: 1, kind: input, shape index: {}]
  %s2 = inlined_call_operand.vmem [shape: f32[32,128], index: 2, kind: input, shape index: {}]
  %s3 = inlined_call_operand.vmem [shape: f32[1,128], index: 3, kind: input, shape index: {}]
  %s4 = inlined_call_operand.vmem [shape: f32[32,128], index: 4, kind: input, shape index: {}]
  %s5 = inlined_call_operand.vmem [shape: f32[32,128], index: 5, kind: input, shape index: {}]
  %s6 = inlined_call_operand.vmem [shape: f32[1,128], index: 6, kind: input, shape index: {}]
  %s7 = inlined_call_operand.vmem [shape: f32[32,16], index: 7, kind: input, shape index: {}]
  %s8 = inlined_call_operand.vmem [shape: f32[1,16], index: 8, kind: input, shape index: {}]
  %s9 = inlined_call_operand.vmem [shape: f32[1,16], index: 9, kind: input, shape index: {}]
  %s10 = inlined_call_operand.<no memory space> [shape: f32[1,1], index: 10, kind: input, shape index: {}]
  %s11 = inlined_call_operand.vmem [shape: f32[8,1], index: 11, kind: output, shape index: {}]
  %s12 = sld [smem:[#allocation0]]
  $region54: #{tpu_custom_call.1} parent=0
    _
  %s14 = ssub.s32 1, %s12
  %s15 = scalar_select 0, %s14, %s12
  %v16 = vstv %s10
  %17 = vst [vmem:[#allocation4] sm:$0x1] %v16
  // Predicated region
  $region2: #{tpu_custom_call.1} parent=0 // pred_check
    _
  $region3: #{tpu_custom_call.1} parent=0 // pred_check_branch
    %19 = sbr.rel (0) target = $region5
  $region4: #{tpu_custom_call.1} parent=0 // pred_region
    _
  $region5: #{tpu_custom_call.1} parent=0 // pred_fallthru
    _
  // Predicated region
  $region6: #{tpu_custom_call.1} parent=0 // pred_check
    _
  $region7: #{tpu_custom_call.1} parent=0 // pred_check_branch
    %21 = sbr.rel (0) target = $region9
  $region8: #{tpu_custom_call.1} parent=0 // pred_region
    _
  $region9: #{tpu_custom_call.1} parent=0 // pred_fallthru
    _
  // Predicated region
  $region10: #{tpu_custom_call.1} parent=0 // pred_check
    _
  $region11: #{tpu_custom_call.1} parent=0 // pred_check_branch
    %23 = sbr.rel (0) target = $region13
  $region12: #{tpu_custom_call.1} parent=0 // pred_region
    _
  $region13: #{tpu_custom_call.1} parent=0 // pred_fallthru
    _
  // Predicated region
  $region14: #{tpu_custom_call.1} parent=0 // pred_check
    _
  $region15: #{tpu_custom_call.1} parent=0 // pred_check_branch
    %25 = sbr.rel (0) target = $region17
  $region16: #{tpu_custom_call.1} parent=0 // pred_region
    _
  $region17: #{tpu_custom_call.1} parent=0 // pred_fallthru
    _
  // Predicated region
  $region18: #{tpu_custom_call.1} parent=0 // pred_check
    _
  $region19: #{tpu_custom_call.1} parent=0 // pred_check_branch
    %27 = sbr.rel (0) target = $region21
  $region20: #{tpu_custom_call.1} parent=0 // pred_region
    _
  $region21: #{tpu_custom_call.1} parent=0 // pred_fallthru
    _
  // Predicated region
  $region22: #{tpu_custom_call.1} parent=0 // pred_check
    _
  $region23: #{tpu_custom_call.1} parent=0 // pred_check_branch
    %29 = sbr.rel (0) target = $region25
  $region24: #{tpu_custom_call.1} parent=0 // pred_region
    _
  $region25: #{tpu_custom_call.1} parent=0 // pred_fallthru
    _
  // Predicated region
  $region26: #{tpu_custom_call.1} parent=0 // pred_check
    _
  $region27: #{tpu_custom_call.1} parent=0 // pred_check_branch
    %31 = sbr.rel (0) target = $region29
  $region28: #{tpu_custom_call.1} parent=0 // pred_region
    _
  $region29: #{tpu_custom_call.1} parent=0 // pred_fallthru
    _
  // Predicated region
  $region30: #{tpu_custom_call.1} parent=0 // pred_check
    _
  $region31: #{tpu_custom_call.1} parent=0 // pred_check_branch
    %33 = sbr.rel (0) target = $region33
  $region32: #{tpu_custom_call.1} parent=0 // pred_region
    _
  $region33: #{tpu_custom_call.1} parent=0 // pred_fallthru
    _
  // Predicated region
  $region34: #{tpu_custom_call.1} parent=0 // pred_check
    _
  $region35: #{tpu_custom_call.1} parent=0 // pred_check_branch
    %35 = sbr.rel (0) target = $region37
  $region36: #{tpu_custom_call.1} parent=0 // pred_region
    _
  $region37: #{tpu_custom_call.1} parent=0 // pred_fallthru
    _
  // Predicated region
  $region38: #{tpu_custom_call.1} parent=0 // pred_check
    _
  $region39: #{tpu_custom_call.1} parent=0 // pred_check_branch
    %37 = sbr.rel (0) target = $region41
  $region40: #{tpu_custom_call.1} parent=0 // pred_region
    _
  $region41: #{tpu_custom_call.1} parent=0 // pred_fallthru
    _
  // Predicated region
  $region42: #{tpu_custom_call.1} parent=0 // pred_check
    _
  $region43: #{tpu_custom_call.1} parent=0 // pred_check_branch
    %39 = sbr.rel (0) target = $region45
  $region44: #{tpu_custom_call.1} parent=0 // pred_region
    _
  $region45: #{tpu_custom_call.1} parent=0 // pred_fallthru
    _
  %v40 = vld [vmem:[%s0] sm:$0xff]
  %v41 = vld [vmem:[%s0 + $0x8] sm:$0xff]
  %v42 = vld [vmem:[%s0 + $0x10] sm:$0xff]
  %v43 = vld [vmem:[%s0 + $0x18] sm:$0xff]
  %v44 = vld [vmem:[%s0 + $0x20] sm:$0xff]
  %v45 = vld [vmem:[%s0 + $0x28] sm:$0xff]
  %v46 = vld [vmem:[%s0 + $0x30] sm:$0xff]
  %v47 = vld [vmem:[%s0 + $0x38] sm:$0xff]
  %v48 = vld [vmem:[%s1] sm:$0xf]
  %v49 = vld [vmem:[%s3] sm:$0x1]
  %v51 = vperm.slane %v49, 0
  %vm53 = vcmask 31744
  %v55 = vsel %vm53, %v40, 0
  %v58 = vsel %vm53, %v41, 0
  %v61 = vsel %vm53, %v42, 0
  %v64 = vsel %vm53, %v43, 0
  %v67 = vsel %vm53, %v44, 0
  %v70 = vsel %vm53, %v45, 0
  %v73 = vsel %vm53, %v46, 0
  %v76 = vsel %vm53, %v47, 0
  %vm78 = vcmask 1043456
  %v80 = vsel %vm78, %v48, 0
  %82 = vmatpush.msra.mxu0 0.0
  %83 = vmatpush.msra.mxu0 0.0
  %84 = vmatpush.msra.mxu0 0.0
  %85 = vmatpush.msra.mxu0 0.0
  %86 = vmatpush.msra.mxu0 0.0
  %87 = vmatpush.msra.mxu0 0.0
  %88 = vmatpush.msra.mxu0 0.0
  %89 = vmatpush.msra.mxu0 0.0
  %90 = vmatpush.msra.mxu0 0.0
  %91 = vmatpush.msra.mxu0 0.0
  %92 = vmatpush.msra.mxu0 0.0
  %93 = vmatpush.msra.mxu0 0.0
  %94 = vmatpush.msra.mxu0 0.0
  %95 = vmatpush.msra.mxu0 0.0
  %96 = vmatpush.msra.mxu0 0.0
  %97 = vmatpush.msra.mxu0 %v80
  %98 = vmatmul.f32.gmra.mxu0 %v55
  %v99 = vpop.f32.mrf.mxu0
  %v100 = vadd.f32 %v51, %v99
  %101 = vmatmul.f32.gmra.mxu0 %v58
  %v102 = vpop.f32.mrf.mxu0
  %v103 = vadd.f32 %v51, %v102
  %104 = vmatmul.f32.gmra.mxu0 %v61
  %v105 = vpop.f32.mrf.mxu0
  %v106 = vadd.f32 %v51, %v105
  %107 = vmatmul.f32.gmra.mxu0 %v64
  %v108 = vpop.f32.mrf.mxu0
  %v109 = vadd.f32 %v51, %v108
  %110 = vmatmul.f32.gmra.mxu0 %v67
  %v111 = vpop.f32.mrf.mxu0
  %v112 = vadd.f32 %v51, %v111
  %113 = vmatmul.f32.gmra.mxu0 %v70
  %v114 = vpop.f32.mrf.mxu0
  %v115 = vadd.f32 %v51, %v114
  %116 = vmatmul.f32.gmra.mxu0 %v73
  %v117 = vpop.f32.mrf.mxu0
  %v118 = vadd.f32 %v51, %v117
  %119 = vmatmul.f32.gmra.mxu0 %v76
  %v120 = vpop.f32.mrf.mxu0
  %v121 = vadd.f32 %v51, %v120
  %122 = vdwg.mxu0
  %123 = vst [vmem:[#allocation2] sm:$0xff] %v100
  %124 = vst [vmem:[#allocation2 + $0x8] sm:$0xff] %v103
  %125 = vst [vmem:[#allocation2 + $0x10] sm:$0xff] %v106
  %126 = vst [vmem:[#allocation2 + $0x18] sm:$0xff] %v109
  %127 = vst [vmem:[#allocation2 + $0x20] sm:$0xff] %v112
  %128 = vst [vmem:[#allocation2 + $0x28] sm:$0xff] %v115
  %129 = vst [vmem:[#allocation2 + $0x30] sm:$0xff] %v118
  %130 = vst [vmem:[#allocation2 + $0x38] sm:$0xff] %v121
  %v131 = vld [vmem:[%s2] sm:$0xff]
  %v132 = vld [vmem:[%s2 + $0x8] sm:$0xff]
  %v133 = vld [vmem:[%s2 + $0x10] sm:$0xff]
  %v134 = vld [vmem:[%s2 + $0x18] sm:$0xff]
  %v135 = vld [vmem:[#allocation2] sm:$0xff]
  %vm136 = vcmask 261120
  %v138 = vsel %vm136, 0.0, 0
  %140 = vmatpush.msra.mxu0 0.0
  %141 = vmatpush.msra.mxu0 0.0
  %142 = vmatpush.msra.mxu0 0.0
  %143 = vmatpush.msra.mxu0 0.0
  %144 = vmatpush.msra.mxu0 0.0
  %145 = vmatpush.msra.mxu0 0.0
  %146 = vmatpush.msra.mxu0 0.0
  %147 = vmatpush.msra.mxu0 0.0
  %148 = vmatpush.msra.mxu0 0.0
  %149 = vmatpush.msra.mxu0 0.0
  %150 = vmatpush.msra.mxu0 0.0
  %151 = vmatpush.msra.mxu0 0.0
  %152 = vmatpush.msra.mxu0 %v134
  %153 = vmatpush.msra.mxu0 %v133
  %154 = vmatpush.msra.mxu0 %v132
  %155 = vmatpush.msra.mxu0 %v131
  %156 = vmatmul.f32.gmra.mxu0 %v138
  %v157 = vpop.f32.mrf.mxu0
  %v158 = vadd.f32 0.0, %v157
  %159 = vdwg.mxu0
  %v160 = vadd.f32 %v135, %v158
  %v161 = vmul.f32 %v160, 0.5
  %v162 = vtanh.pop %v161
  %v163 = vmul.f32 %v162, 0.5
  %v164 = vadd.f32 %v163, 0.5
  %v165 = vtanh.pop %v160
  %v166 = vmul.f32 %v164, 0.0
  %168 = vrot.lane.b32.xlu0 %v165, 64
  %v169 = vpop.permute.xlu0 %168
  %v171 = vmul.f32 %v164, %v169
  %173 = vrot.lane.b32.xlu0 %v171, 32
  %v174 = vpop.permute.xlu0 %173
  %v176 = vadd.f32 %v166, %v174
  %v177 = vtanh.pop %v176
  %179 = vrot.lane.b32.xlu0 %v177, 64
  %v180 = vpop.permute.xlu0 %179
  %v182 = vmul.f32 %v164, %v180
  %184 = vrot.lane.b32.xlu0 %v182, 32
  %v185 = vpop.permute.xlu0 %184
  %187 = vst.msk [vmem:[#allocation3] sm:$0xff] %vm136, %v185
  %s188 = scalar_lea.vmem [#allocation2], 8
  %v189 = vld [vmem:[%s188] sm:$0xff]
  %v190 = vsel %vm136, %v185, 0
  %192 = vmatpush.msra.mxu0 0.0
  %193 = vmatpush.msra.mxu0 0.0
  %194 = vmatpush.msra.mxu0 0.0
  %195 = vmatpush.msra.mxu0 0.0
  %196 = vmatpush.msra.mxu0 0.0
  %197 = vmatpush.msra.mxu0 0.0
  %198 = vmatpush.msra.mxu0 0.0
  %199 = vmatpush.msra.mxu0 0.0
  %200 = vmatpush.msra.mxu0 0.0
  %201 = vmatpush.msra.mxu0 0.0
  %202 = vmatpush.msra.mxu0 0.0
  %203 = vmatpush.msra.mxu0 0.0
  %204 = vmatpush.msra.mxu0 %v134
  %205 = vmatpush.msra.mxu0 %v133
  %206 = vmatpush.msra.mxu0 %v132
  %207 = vmatpush.msra.mxu0 %v131
  %208 = vmatmul.f32.gmra.mxu0 %v190
  %v209 = vpop.f32.mrf.mxu0
  %v210 = vadd.f32 0.0, %v209
  %211 = vdwg.mxu0
  %v212 = vadd.f32 %v189, %v210
  %v213 = vmul.f32 %v212, 0.5
  %v214 = vtanh.pop %v213
  %v215 = vmul.f32 %v214, 0.5
  %v216 = vadd.f32 %v215, 0.5
  %v217 = vtanh.pop %v212
  %v218 = vmul.f32 %v216, %v176
  %220 = vrot.lane.b32.xlu0 %v217, 64
  %v221 = vpop.permute.xlu0 %220
  %v223 = vmul.f32 %v216, %v221
  %225 = vrot.lane.b32.xlu0 %v223, 32
  %v226 = vpop.permute.xlu0 %225
  %v228 = vadd.f32 %v218, %v226
  %v229 = vtanh.pop %v228
  %231 = vrot.lane.b32.xlu0 %v229, 64
  %v232 = vpop.permute.xlu0 %231
  %v234 = vmul.f32 %v216, %v232
  %236 = vrot.lane.b32.xlu0 %v234, 32
  %v237 = vpop.permute.xlu0 %236
  %s239 = scalar_lea.vmem [#allocation3], 8
  %240 = vst.msk [vmem:[%s239] sm:$0xff] %vm136, %v237
  %s241 = scalar_lea.vmem [#allocation2], 16
  %v242 = vld [vmem:[%s241] sm:$0xff]
  %v243 = vsel %vm136, %v237, 0
  %245 = vmatpush.msra.mxu0 0.0
  %246 = vmatpush.msra.mxu0 0.0
  %247 = vmatpush.msra.mxu0 0.0
  %248 = vmatpush.msra.mxu0 0.0
  %249 = vmatpush.msra.mxu0 0.0
  %250 = vmatpush.msra.mxu0 0.0
  %251 = vmatpush.msra.mxu0 0.0
  %252 = vmatpush.msra.mxu0 0.0
  %253 = vmatpush.msra.mxu0 0.0
  %254 = vmatpush.msra.mxu0 0.0
  %255 = vmatpush.msra.mxu0 0.0
  %256 = vmatpush.msra.mxu0 0.0
  %257 = vmatpush.msra.mxu0 %v134
  %258 = vmatpush.msra.mxu0 %v133
  %259 = vmatpush.msra.mxu0 %v132
  %260 = vmatpush.msra.mxu0 %v131
  %261 = vmatmul.f32.gmra.mxu0 %v243
  %v262 = vpop.f32.mrf.mxu0
  %v263 = vadd.f32 0.0, %v262
  %264 = vdwg.mxu0
  %v265 = vadd.f32 %v242, %v263
  %v266 = vmul.f32 %v265, 0.5
  %v267 = vtanh.pop %v266
  %v268 = vmul.f32 %v267, 0.5
  %v269 = vadd.f32 %v268, 0.5
  %v270 = vtanh.pop %v265
  %v271 = vmul.f32 %v269, %v228
  %273 = vrot.lane.b32.xlu0 %v270, 64
  %v274 = vpop.permute.xlu0 %273
  %v276 = vmul.f32 %v269, %v274
  %278 = vrot.lane.b32.xlu0 %v276, 32
  %v279 = vpop.permute.xlu0 %278
  %v281 = vadd.f32 %v271, %v279
  %v282 = vtanh.pop %v281
  %284 = vrot.lane.b32.xlu0 %v282, 64
  %v285 = vpop.permute.xlu0 %284
  %v287 = vmul.f32 %v269, %v285
  %289 = vrot.lane.b32.xlu0 %v287, 32
  %v290 = vpop.permute.xlu0 %289
  %s292 = scalar_lea.vmem [#allocation3], 16
  %293 = vst.msk [vmem:[%s292] sm:$0xff] %vm136, %v290
  %s294 = scalar_lea.vmem [#allocation2], 24
  %v295 = vld [vmem:[%s294] sm:$0xff]
  %v296 = vsel %vm136, %v290, 0
  %298 = vmatpush.msra.mxu0 0.0
  %299 = vmatpush.msra.mxu0 0.0
  %300 = vmatpush.msra.mxu0 0.0
  %301 = vmatpush.msra.mxu0 0.0
  %302 = vmatpush.msra.mxu0 0.0
  %303 = vmatpush.msra.mxu0 0.0
  %304 = vmatpush.msra.mxu0 0.0
  %305 = vmatpush.msra.mxu0 0.0
  %306 = vmatpush.msra.mxu0 0.0
  %307 = vmatpush.msra.mxu0 0.0
  %308 = vmatpush.msra.mxu0 0.0
  %309 = vmatpush.msra.mxu0 0.0
  %310 = vmatpush.msra.mxu0 %v134
  %311 = vmatpush.msra.mxu0 %v133
  %312 = vmatpush.msra.mxu0 %v132
  %313 = vmatpush.msra.mxu0 %v131
  %314 = vmatmul.f32.gmra.mxu0 %v296
  %v315 = vpop.f32.mrf.mxu0
  %v316 = vadd.f32 0.0, %v315
  %317 = vdwg.mxu0
  %v318 = vadd.f32 %v295, %v316
  %v319 = vmul.f32 %v318, 0.5
  %v320 = vtanh.pop %v319
  %v321 = vmul.f32 %v320, 0.5
  %v322 = vadd.f32 %v321, 0.5
  %v323 = vtanh.pop %v318
  %v324 = vmul.f32 %v322, %v281
  %326 = vrot.lane.b32.xlu0 %v323, 64
  %v327 = vpop.permute.xlu0 %326
  %v329 = vmul.f32 %v322, %v327
  %331 = vrot.lane.b32.xlu0 %v329, 32
  %v332 = vpop.permute.xlu0 %331
  %v334 = vadd.f32 %v324, %v332
  %v335 = vtanh.pop %v334
  %337 = vrot.lane.b32.xlu0 %v335, 64
  %v338 = vpop.permute.xlu0 %337
  %v340 = vmul.f32 %v322, %v338
  %342 = vrot.lane.b32.xlu0 %v340, 32
  %v343 = vpop.permute.xlu0 %342
  %s345 = scalar_lea.vmem [#allocation3], 24
  %346 = vst.msk [vmem:[%s345] sm:$0xff] %vm136, %v343
  %s347 = scalar_lea.vmem [#allocation2], 32
  %v348 = vld [vmem:[%s347] sm:$0xff]
  %v349 = vsel %vm136, %v343, 0
  %351 = vmatpush.msra.mxu0 0.0
  %352 = vmatpush.msra.mxu0 0.0
  %353 = vmatpush.msra.mxu0 0.0
  %354 = vmatpush.msra.mxu0 0.0
  %355 = vmatpush.msra.mxu0 0.0
  %356 = vmatpush.msra.mxu0 0.0
  %357 = vmatpush.msra.mxu0 0.0
  %358 = vmatpush.msra.mxu0 0.0
  %359 = vmatpush.msra.mxu0 0.0
  %360 = vmatpush.msra.mxu0 0.0
  %361 = vmatpush.msra.mxu0 0.0
  %362 = vmatpush.msra.mxu0 0.0
  %363 = vmatpush.msra.mxu0 %v134
  %364 = vmatpush.msra.mxu0 %v133
  %365 = vmatpush.msra.mxu0 %v132
  %366 = vmatpush.msra.mxu0 %v131
  %367 = vmatmul.f32.gmra.mxu0 %v349
  %v368 = vpop.f32.mrf.mxu0
  %v369 = vadd.f32 0.0, %v368
  %370 = vdwg.mxu0
  %v371 = vadd.f32 %v348, %v369
  %v372 = vmul.f32 %v371, 0.5
  %v373 = vtanh.pop %v372
  %v374 = vmul.f32 %v373, 0.5
  %v375 = vadd.f32 %v374, 0.5
  %v376 = vtanh.pop %v371
  %v377 = vmul.f32 %v375, %v334
  %379 = vrot.lane.b32.xlu0 %v376, 64
  %v380 = vpop.permute.xlu0 %379
  %v382 = vmul.f32 %v375, %v380
  %384 = vrot.lane.b32.xlu0 %v382, 32
  %v385 = vpop.permute.xlu0 %384
  %v387 = vadd.f32 %v377, %v385
  %v388 = vtanh.pop %v387
  %390 = vrot.lane.b32.xlu0 %v388, 64
  %v391 = vpop.permute.xlu0 %390
  %v393 = vmul.f32 %v375, %v391
  %395 = vrot.lane.b32.xlu0 %v393, 32
  %v396 = vpop.permute.xlu0 %395
  %s398 = scalar_lea.vmem [#allocation3], 32
  %399 = vst.msk [vmem:[%s398] sm:$0xff] %vm136, %v396
  %s400 = scalar_lea.vmem [#allocation2], 40
  %v401 = vld [vmem:[%s400] sm:$0xff]
  %v402 = vsel %vm136, %v396, 0
  %404 = vmatpush.msra.mxu0 0.0
  %405 = vmatpush.msra.mxu0 0.0
  %406 = vmatpush.msra.mxu0 0.0
  %407 = vmatpush.msra.mxu0 0.0
  %408 = vmatpush.msra.mxu0 0.0
  %409 = vmatpush.msra.mxu0 0.0
  %410 = vmatpush.msra.mxu0 0.0
  %411 = vmatpush.msra.mxu0 0.0
  %412 = vmatpush.msra.mxu0 0.0
  %413 = vmatpush.msra.mxu0 0.0
  %414 = vmatpush.msra.mxu0 0.0
  %415 = vmatpush.msra.mxu0 0.0
  %416 = vmatpush.msra.mxu0 %v134
  %417 = vmatpush.msra.mxu0 %v133
  %418 = vmatpush.msra.mxu0 %v132
  %419 = vmatpush.msra.mxu0 %v131
  %420 = vmatmul.f32.gmra.mxu0 %v402
  %v421 = vpop.f32.mrf.mxu0
  %v422 = vadd.f32 0.0, %v421
  %423 = vdwg.mxu0
  %v424 = vadd.f32 %v401, %v422
  %v425 = vmul.f32 %v424, 0.5
  %v426 = vtanh.pop %v425
  %v427 = vmul.f32 %v426, 0.5
  %v428 = vadd.f32 %v427, 0.5
  %v429 = vtanh.pop %v424
  %v430 = vmul.f32 %v428, %v387
  %432 = vrot.lane.b32.xlu0 %v429, 64
  %v433 = vpop.permute.xlu0 %432
  %v435 = vmul.f32 %v428, %v433
  %437 = vrot.lane.b32.xlu0 %v435, 32
  %v438 = vpop.permute.xlu0 %437
  %v440 = vadd.f32 %v430, %v438
  %v441 = vtanh.pop %v440
  %443 = vrot.lane.b32.xlu0 %v441, 64
  %v444 = vpop.permute.xlu0 %443
  %v446 = vmul.f32 %v428, %v444
  %448 = vrot.lane.b32.xlu0 %v446, 32
  %v449 = vpop.permute.xlu0 %448
  %s451 = scalar_lea.vmem [#allocation3], 40
  %452 = vst.msk [vmem:[%s451] sm:$0xff] %vm136, %v449
  %s453 = scalar_lea.vmem [#allocation2], 48
  %v454 = vld [vmem:[%s453] sm:$0xff]
  %v455 = vsel %vm136, %v449, 0
  %457 = vmatpush.msra.mxu0 0.0
  %458 = vmatpush.msra.mxu0 0.0
  %459 = vmatpush.msra.mxu0 0.0
  %460 = vmatpush.msra.mxu0 0.0
  %461 = vmatpush.msra.mxu0 0.0
  %462 = vmatpush.msra.mxu0 0.0
  %463 = vmatpush.msra.mxu0 0.0
  %464 = vmatpush.msra.mxu0 0.0
  %465 = vmatpush.msra.mxu0 0.0
  %466 = vmatpush.msra.mxu0 0.0
  %467 = vmatpush.msra.mxu0 0.0
  %468 = vmatpush.msra.mxu0 0.0
  %469 = vmatpush.msra.mxu0 %v134
  %470 = vmatpush.msra.mxu0 %v133
  %471 = vmatpush.msra.mxu0 %v132
  %472 = vmatpush.msra.mxu0 %v131
  %473 = vmatmul.f32.gmra.mxu0 %v455
  %v474 = vpop.f32.mrf.mxu0
  %v475 = vadd.f32 0.0, %v474
  %476 = vdwg.mxu0
  %v477 = vadd.f32 %v454, %v475
  %v478 = vmul.f32 %v477, 0.5
  %v479 = vtanh.pop %v478
  %v480 = vmul.f32 %v479, 0.5
  %v481 = vadd.f32 %v480, 0.5
  %v482 = vtanh.pop %v477
  %v483 = vmul.f32 %v481, %v440
  %485 = vrot.lane.b32.xlu0 %v482, 64
  %v486 = vpop.permute.xlu0 %485
  %v488 = vmul.f32 %v481, %v486
  %490 = vrot.lane.b32.xlu0 %v488, 32
  %v491 = vpop.permute.xlu0 %490
  %v493 = vadd.f32 %v483, %v491
  %v494 = vtanh.pop %v493
  %496 = vrot.lane.b32.xlu0 %v494, 64
  %v497 = vpop.permute.xlu0 %496
  %v499 = vmul.f32 %v481, %v497
  %501 = vrot.lane.b32.xlu0 %v499, 32
  %v502 = vpop.permute.xlu0 %501
  %s504 = scalar_lea.vmem [#allocation3], 48
  %505 = vst.msk [vmem:[%s504] sm:$0xff] %vm136, %v502
  %s506 = scalar_lea.vmem [#allocation2], 56
  %v507 = vld [vmem:[%s506] sm:$0xff]
  %v508 = vsel %vm136, %v502, 0
  %510 = vmatpush.msra.mxu0 0.0
  %511 = vmatpush.msra.mxu0 0.0
  %512 = vmatpush.msra.mxu0 0.0
  %513 = vmatpush.msra.mxu0 0.0
  %514 = vmatpush.msra.mxu0 0.0
  %515 = vmatpush.msra.mxu0 0.0
  %516 = vmatpush.msra.mxu0 0.0
  %517 = vmatpush.msra.mxu0 0.0
  %518 = vmatpush.msra.mxu0 0.0
  %519 = vmatpush.msra.mxu0 0.0
  %520 = vmatpush.msra.mxu0 0.0
  %521 = vmatpush.msra.mxu0 0.0
  %522 = vmatpush.msra.mxu0 %v134
  %523 = vmatpush.msra.mxu0 %v133
  %524 = vmatpush.msra.mxu0 %v132
  %525 = vmatpush.msra.mxu0 %v131
  %526 = vmatmul.f32.gmra.mxu0 %v508
  %v527 = vpop.f32.mrf.mxu0
  %v528 = vadd.f32 0.0, %v527
  %529 = vdwg.mxu0
  %v530 = vadd.f32 %v507, %v528
  %v531 = vmul.f32 %v530, 0.5
  %v532 = vtanh.pop %v531
  %v533 = vmul.f32 %v532, 0.5
  %v534 = vadd.f32 %v533, 0.5
  %v535 = vtanh.pop %v530
  %v536 = vmul.f32 %v534, %v493
  %538 = vrot.lane.b32.xlu0 %v535, 64
  %v539 = vpop.permute.xlu0 %538
  %v541 = vmul.f32 %v534, %v539
  %543 = vrot.lane.b32.xlu0 %v541, 32
  %v544 = vpop.permute.xlu0 %543
  %v546 = vadd.f32 %v536, %v544
  %v547 = vtanh.pop %v546
  %549 = vrot.lane.b32.xlu0 %v547, 64
  %v550 = vpop.permute.xlu0 %549
  %v552 = vmul.f32 %v534, %v550
  %554 = vrot.lane.b32.xlu0 %v552, 32
  %v555 = vpop.permute.xlu0 %554
  %s557 = scalar_lea.vmem [#allocation3], 56
  %558 = vst.msk [vmem:[%s557] sm:$0xff] %vm136, %v555
  %v559 = vld [vmem:[#allocation3] sm:$0xff]
  %v560 = vld [vmem:[#allocation3 + $0x8] sm:$0xff]
  %v561 = vld [vmem:[#allocation3 + $0x10] sm:$0xff]
  %v562 = vld [vmem:[#allocation3 + $0x18] sm:$0xff]
  %v563 = vld [vmem:[#allocation3 + $0x20] sm:$0xff]
  %v564 = vld [vmem:[#allocation3 + $0x28] sm:$0xff]
  %v565 = vld [vmem:[#allocation3 + $0x30] sm:$0xff]
  %v566 = vld [vmem:[#allocation3 + $0x38] sm:$0xff]
  %v567 = vld [vmem:[%s4] sm:$0xff]
  %v568 = vld [vmem:[%s4 + $0x8] sm:$0xff]
  %v569 = vld [vmem:[%s4 + $0x10] sm:$0xff]
  %v570 = vld [vmem:[%s4 + $0x18] sm:$0xff]
  %v571 = vld [vmem:[%s6] sm:$0x1]
  %v573 = vperm.slane %v571, 0
  %v576 = vsel %vm136, %v559, 0
  %v579 = vsel %vm136, %v560, 0
  %v582 = vsel %vm136, %v561, 0
  %v585 = vsel %vm136, %v562, 0
  %v588 = vsel %vm136, %v563, 0
  %v591 = vsel %vm136, %v564, 0
  %v594 = vsel %vm136, %v565, 0
  %v597 = vsel %vm136, %v566, 0
  %599 = vmatpush.msra.mxu0 0.0
  %600 = vmatpush.msra.mxu0 0.0
  %601 = vmatpush.msra.mxu0 0.0
  %602 = vmatpush.msra.mxu0 0.0
  %603 = vmatpush.msra.mxu0 0.0
  %604 = vmatpush.msra.mxu0 0.0
  %605 = vmatpush.msra.mxu0 0.0
  %606 = vmatpush.msra.mxu0 0.0
  %607 = vmatpush.msra.mxu0 0.0
  %608 = vmatpush.msra.mxu0 0.0
  %609 = vmatpush.msra.mxu0 0.0
  %610 = vmatpush.msra.mxu0 0.0
  %611 = vmatpush.msra.mxu0 %v570
  %612 = vmatpush.msra.mxu0 %v569
  %613 = vmatpush.msra.mxu0 %v568
  %614 = vmatpush.msra.mxu0 %v567
  %615 = vmatmul.f32.gmra.mxu0 %v576
  %v616 = vpop.f32.mrf.mxu0
  %v617 = vadd.f32 %v573, %v616
  %618 = vmatmul.f32.gmra.mxu0 %v579
  %v619 = vpop.f32.mrf.mxu0
  %v620 = vadd.f32 %v573, %v619
  %621 = vmatmul.f32.gmra.mxu0 %v582
  %v622 = vpop.f32.mrf.mxu0
  %v623 = vadd.f32 %v573, %v622
  %624 = vmatmul.f32.gmra.mxu0 %v585
  %v625 = vpop.f32.mrf.mxu0
  %v626 = vadd.f32 %v573, %v625
  %627 = vmatmul.f32.gmra.mxu0 %v588
  %v628 = vpop.f32.mrf.mxu0
  %v629 = vadd.f32 %v573, %v628
  %630 = vmatmul.f32.gmra.mxu0 %v591
  %v631 = vpop.f32.mrf.mxu0
  %v632 = vadd.f32 %v573, %v631
  %633 = vmatmul.f32.gmra.mxu0 %v594
  %v634 = vpop.f32.mrf.mxu0
  %v635 = vadd.f32 %v573, %v634
  %636 = vmatmul.f32.gmra.mxu0 %v597
  %v637 = vpop.f32.mrf.mxu0
  %v638 = vadd.f32 %v573, %v637
  %639 = vdwg.mxu0
  %640 = vst [vmem:[#allocation2] sm:$0xff] %v617
  %641 = vst [vmem:[#allocation2 + $0x8] sm:$0xff] %v620
  %642 = vst [vmem:[#allocation2 + $0x10] sm:$0xff] %v623
  %643 = vst [vmem:[#allocation2 + $0x18] sm:$0xff] %v626
  %644 = vst [vmem:[#allocation2 + $0x20] sm:$0xff] %v629
  %645 = vst [vmem:[#allocation2 + $0x28] sm:$0xff] %v632
  %646 = vst [vmem:[#allocation2 + $0x30] sm:$0xff] %v635
  %647 = vst [vmem:[#allocation2 + $0x38] sm:$0xff] %v638
  %v648 = vld [vmem:[%s5] sm:$0xff]
  %v649 = vld [vmem:[%s5 + $0x8] sm:$0xff]
  %v650 = vld [vmem:[%s5 + $0x10] sm:$0xff]
  %v651 = vld [vmem:[%s5 + $0x18] sm:$0xff]
  %v652 = vld [vmem:[#allocation2] sm:$0xff]
  %653 = vmatpush.msra.mxu0 0.0
  %654 = vmatpush.msra.mxu0 0.0
  %655 = vmatpush.msra.mxu0 0.0
  %656 = vmatpush.msra.mxu0 0.0
  %657 = vmatpush.msra.mxu0 0.0
  %658 = vmatpush.msra.mxu0 0.0
  %659 = vmatpush.msra.mxu0 0.0
  %660 = vmatpush.msra.mxu0 0.0
  %661 = vmatpush.msra.mxu0 0.0
  %662 = vmatpush.msra.mxu0 0.0
  %663 = vmatpush.msra.mxu0 0.0
  %664 = vmatpush.msra.mxu0 0.0
  %665 = vmatpush.msra.mxu0 %v651
  %666 = vmatpush.msra.mxu0 %v650
  %667 = vmatpush.msra.mxu0 %v649
  %668 = vmatpush.msra.mxu0 %v648
  %669 = vmatmul.f32.gmra.mxu0 %v138
  %v670 = vpop.f32.mrf.mxu0
  %v671 = vadd.f32 0.0, %v670
  %672 = vdwg.mxu0
  %v673 = vadd.f32 %v652, %v671
  %v674 = vmul.f32 %v673, 0.5
  %v675 = vtanh.pop %v674
  %v676 = vmul.f32 %v675, 0.5
  %v677 = vadd.f32 %v676, 0.5
  %v678 = vtanh.pop %v673
  %v679 = vmul.f32 %v677, 0.0
  %681 = vrot.lane.b32.xlu0 %v678, 64
  %v682 = vpop.permute.xlu0 %681
  %v684 = vmul.f32 %v677, %v682
  %686 = vrot.lane.b32.xlu0 %v684, 32
  %v687 = vpop.permute.xlu0 %686
  %v689 = vadd.f32 %v679, %v687
  %v690 = vtanh.pop %v689
  %692 = vrot.lane.b32.xlu0 %v690, 64
  %v693 = vpop.permute.xlu0 %692
  %v695 = vmul.f32 %v677, %v693
  %v696 = vld [vmem:[%s188] sm:$0xff]
  %698 = vrot.lane.b32.xlu0 %v695, 32
  %v699 = vpop.permute.xlu0 %698
  %v700 = vsel %vm136, %v699, 0
  %702 = vmatpush.msra.mxu0 0.0
  %703 = vmatpush.msra.mxu0 0.0
  %704 = vmatpush.msra.mxu0 0.0
  %705 = vmatpush.msra.mxu0 0.0
  %706 = vmatpush.msra.mxu0 0.0
  %707 = vmatpush.msra.mxu0 0.0
  %708 = vmatpush.msra.mxu0 0.0
  %709 = vmatpush.msra.mxu0 0.0
  %710 = vmatpush.msra.mxu0 0.0
  %711 = vmatpush.msra.mxu0 0.0
  %712 = vmatpush.msra.mxu0 0.0
  %713 = vmatpush.msra.mxu0 0.0
  %714 = vmatpush.msra.mxu0 %v651
  %715 = vmatpush.msra.mxu0 %v650
  %716 = vmatpush.msra.mxu0 %v649
  %717 = vmatpush.msra.mxu0 %v648
  %718 = vmatmul.f32.gmra.mxu0 %v700
  %v719 = vpop.f32.mrf.mxu0
  %v720 = vadd.f32 0.0, %v719
  %721 = vdwg.mxu0
  %v722 = vadd.f32 %v696, %v720
  %v723 = vmul.f32 %v722, 0.5
  %v724 = vtanh.pop %v723
  %v725 = vmul.f32 %v724, 0.5
  %v726 = vadd.f32 %v725, 0.5
  %v727 = vtanh.pop %v722
  %v728 = vmul.f32 %v726, %v689
  %730 = vrot.lane.b32.xlu0 %v727, 64
  %v731 = vpop.permute.xlu0 %730
  %v733 = vmul.f32 %v726, %v731
  %735 = vrot.lane.b32.xlu0 %v733, 32
  %v736 = vpop.permute.xlu0 %735
  %v738 = vadd.f32 %v728, %v736
  %v739 = vtanh.pop %v738
  %741 = vrot.lane.b32.xlu0 %v739, 64
  %v742 = vpop.permute.xlu0 %741
  %v744 = vmul.f32 %v726, %v742
  %v745 = vld [vmem:[%s241] sm:$0xff]
  %747 = vrot.lane.b32.xlu0 %v744, 32
  %v748 = vpop.permute.xlu0 %747
  %v749 = vsel %vm136, %v748, 0
  %751 = vmatpush.msra.mxu0 0.0
  %752 = vmatpush.msra.mxu0 0.0
  %753 = vmatpush.msra.mxu0 0.0
  %754 = vmatpush.msra.mxu0 0.0
  %755 = vmatpush.msra.mxu0 0.0
  %756 = vmatpush.msra.mxu0 0.0
  %757 = vmatpush.msra.mxu0 0.0
  %758 = vmatpush.msra.mxu0 0.0
  %759 = vmatpush.msra.mxu0 0.0
  %760 = vmatpush.msra.mxu0 0.0
  %761 = vmatpush.msra.mxu0 0.0
  %762 = vmatpush.msra.mxu0 0.0
  %763 = vmatpush.msra.mxu0 %v651
  %764 = vmatpush.msra.mxu0 %v650
  %765 = vmatpush.msra.mxu0 %v649
  %766 = vmatpush.msra.mxu0 %v648
  %767 = vmatmul.f32.gmra.mxu0 %v749
  %v768 = vpop.f32.mrf.mxu0
  %v769 = vadd.f32 0.0, %v768
  %770 = vdwg.mxu0
  %v771 = vadd.f32 %v745, %v769
  %v772 = vmul.f32 %v771, 0.5
  %v773 = vtanh.pop %v772
  %v774 = vmul.f32 %v773, 0.5
  %v775 = vadd.f32 %v774, 0.5
  %v776 = vtanh.pop %v771
  %v777 = vmul.f32 %v775, %v738
  %779 = vrot.lane.b32.xlu0 %v776, 64
  %v780 = vpop.permute.xlu0 %779
  %v782 = vmul.f32 %v775, %v780
  %784 = vrot.lane.b32.xlu0 %v782, 32
  %v785 = vpop.permute.xlu0 %784
  %v787 = vadd.f32 %v777, %v785
  %v788 = vtanh.pop %v787
  %790 = vrot.lane.b32.xlu0 %v788, 64
  %v791 = vpop.permute.xlu0 %790
  %v793 = vmul.f32 %v775, %v791
  %v794 = vld [vmem:[%s294] sm:$0xff]
  %796 = vrot.lane.b32.xlu0 %v793, 32
  %v797 = vpop.permute.xlu0 %796
  %v798 = vsel %vm136, %v797, 0
  %800 = vmatpush.msra.mxu0 0.0
  %801 = vmatpush.msra.mxu0 0.0
  %802 = vmatpush.msra.mxu0 0.0
  %803 = vmatpush.msra.mxu0 0.0
  %804 = vmatpush.msra.mxu0 0.0
  %805 = vmatpush.msra.mxu0 0.0
  %806 = vmatpush.msra.mxu0 0.0
  %807 = vmatpush.msra.mxu0 0.0
  %808 = vmatpush.msra.mxu0 0.0
  %809 = vmatpush.msra.mxu0 0.0
  %810 = vmatpush.msra.mxu0 0.0
  %811 = vmatpush.msra.mxu0 0.0
  %812 = vmatpush.msra.mxu0 %v651
  %813 = vmatpush.msra.mxu0 %v650
  %814 = vmatpush.msra.mxu0 %v649
  %815 = vmatpush.msra.mxu0 %v648
  %816 = vmatmul.f32.gmra.mxu0 %v798
  %v817 = vpop.f32.mrf.mxu0
  %v818 = vadd.f32 0.0, %v817
  %819 = vdwg.mxu0
  %v820 = vadd.f32 %v794, %v818
  %v821 = vmul.f32 %v820, 0.5
  %v822 = vtanh.pop %v821
  %v823 = vmul.f32 %v822, 0.5
  %v824 = vadd.f32 %v823, 0.5
  %v825 = vtanh.pop %v820
  %v826 = vmul.f32 %v824, %v787
  %828 = vrot.lane.b32.xlu0 %v825, 64
  %v829 = vpop.permute.xlu0 %828
  %v831 = vmul.f32 %v824, %v829
  %833 = vrot.lane.b32.xlu0 %v831, 32
  %v834 = vpop.permute.xlu0 %833
  %v836 = vadd.f32 %v826, %v834
  %v837 = vtanh.pop %v836
  %839 = vrot.lane.b32.xlu0 %v837, 64
  %v840 = vpop.permute.xlu0 %839
  %v842 = vmul.f32 %v824, %v840
  %v843 = vld [vmem:[%s347] sm:$0xff]
  %845 = vrot.lane.b32.xlu0 %v842, 32
  %v846 = vpop.permute.xlu0 %845
  %v847 = vsel %vm136, %v846, 0
  %849 = vmatpush.msra.mxu0 0.0
  %850 = vmatpush.msra.mxu0 0.0
  %851 = vmatpush.msra.mxu0 0.0
  %852 = vmatpush.msra.mxu0 0.0
  %853 = vmatpush.msra.mxu0 0.0
  %854 = vmatpush.msra.mxu0 0.0
  %855 = vmatpush.msra.mxu0 0.0
  %856 = vmatpush.msra.mxu0 0.0
  %857 = vmatpush.msra.mxu0 0.0
  %858 = vmatpush.msra.mxu0 0.0
  %859 = vmatpush.msra.mxu0 0.0
  %860 = vmatpush.msra.mxu0 0.0
  %861 = vmatpush.msra.mxu0 %v651
  %862 = vmatpush.msra.mxu0 %v650
  %863 = vmatpush.msra.mxu0 %v649
  %864 = vmatpush.msra.mxu0 %v648
  %865 = vmatmul.f32.gmra.mxu0 %v847
  %v866 = vpop.f32.mrf.mxu0
  %v867 = vadd.f32 0.0, %v866
  %868 = vdwg.mxu0
  %v869 = vadd.f32 %v843, %v867
  %v870 = vmul.f32 %v869, 0.5
  %v871 = vtanh.pop %v870
  %v872 = vmul.f32 %v871, 0.5
  %v873 = vadd.f32 %v872, 0.5
  %v874 = vtanh.pop %v869
  %v875 = vmul.f32 %v873, %v836
  %877 = vrot.lane.b32.xlu0 %v874, 64
  %v878 = vpop.permute.xlu0 %877
  %v880 = vmul.f32 %v873, %v878
  %882 = vrot.lane.b32.xlu0 %v880, 32
  %v883 = vpop.permute.xlu0 %882
  %v885 = vadd.f32 %v875, %v883
  %v886 = vtanh.pop %v885
  %888 = vrot.lane.b32.xlu0 %v886, 64
  %v889 = vpop.permute.xlu0 %888
  %v891 = vmul.f32 %v873, %v889
  %v892 = vld [vmem:[%s400] sm:$0xff]
  %894 = vrot.lane.b32.xlu0 %v891, 32
  %v895 = vpop.permute.xlu0 %894
  %v896 = vsel %vm136, %v895, 0
  %898 = vmatpush.msra.mxu0 0.0
  %899 = vmatpush.msra.mxu0 0.0
  %900 = vmatpush.msra.mxu0 0.0
  %901 = vmatpush.msra.mxu0 0.0
  %902 = vmatpush.msra.mxu0 0.0
  %903 = vmatpush.msra.mxu0 0.0
  %904 = vmatpush.msra.mxu0 0.0
  %905 = vmatpush.msra.mxu0 0.0
  %906 = vmatpush.msra.mxu0 0.0
  %907 = vmatpush.msra.mxu0 0.0
  %908 = vmatpush.msra.mxu0 0.0
  %909 = vmatpush.msra.mxu0 0.0
  %910 = vmatpush.msra.mxu0 %v651
  %911 = vmatpush.msra.mxu0 %v650
  %912 = vmatpush.msra.mxu0 %v649
  %913 = vmatpush.msra.mxu0 %v648
  %914 = vmatmul.f32.gmra.mxu0 %v896
  %v915 = vpop.f32.mrf.mxu0
  %v916 = vadd.f32 0.0, %v915
  %917 = vdwg.mxu0
  %v918 = vadd.f32 %v892, %v916
  %v919 = vmul.f32 %v918, 0.5
  %v920 = vtanh.pop %v919
  %v921 = vmul.f32 %v920, 0.5
  %v922 = vadd.f32 %v921, 0.5
  %v923 = vtanh.pop %v918
  %v924 = vmul.f32 %v922, %v885
  %926 = vrot.lane.b32.xlu0 %v923, 64
  %v927 = vpop.permute.xlu0 %926
  %v929 = vmul.f32 %v922, %v927
  %931 = vrot.lane.b32.xlu0 %v929, 32
  %v932 = vpop.permute.xlu0 %931
  %v934 = vadd.f32 %v924, %v932
  %v935 = vtanh.pop %v934
  %937 = vrot.lane.b32.xlu0 %v935, 64
  %v938 = vpop.permute.xlu0 %937
  %v940 = vmul.f32 %v922, %v938
  %v941 = vld [vmem:[%s453] sm:$0xff]
  %943 = vrot.lane.b32.xlu0 %v940, 32
  %v944 = vpop.permute.xlu0 %943
  %v945 = vsel %vm136, %v944, 0
  %947 = vmatpush.msra.mxu0 0.0
  %948 = vmatpush.msra.mxu0 0.0
  %949 = vmatpush.msra.mxu0 0.0
  %950 = vmatpush.msra.mxu0 0.0
  %951 = vmatpush.msra.mxu0 0.0
  %952 = vmatpush.msra.mxu0 0.0
  %953 = vmatpush.msra.mxu0 0.0
  %954 = vmatpush.msra.mxu0 0.0
  %955 = vmatpush.msra.mxu0 0.0
  %956 = vmatpush.msra.mxu0 0.0
  %957 = vmatpush.msra.mxu0 0.0
  %958 = vmatpush.msra.mxu0 0.0
  %959 = vmatpush.msra.mxu0 %v651
  %960 = vmatpush.msra.mxu0 %v650
  %961 = vmatpush.msra.mxu0 %v649
  %962 = vmatpush.msra.mxu0 %v648
  %963 = vmatmul.f32.gmra.mxu0 %v945
  %v964 = vpop.f32.mrf.mxu0
  %v965 = vadd.f32 0.0, %v964
  %966 = vdwg.mxu0
  %v967 = vadd.f32 %v941, %v965
  %v968 = vmul.f32 %v967, 0.5
  %v969 = vtanh.pop %v968
  %v970 = vmul.f32 %v969, 0.5
  %v971 = vadd.f32 %v970, 0.5
  %v972 = vtanh.pop %v967
  %v973 = vmul.f32 %v971, %v934
  %975 = vrot.lane.b32.xlu0 %v972, 64
  %v976 = vpop.permute.xlu0 %975
  %v978 = vmul.f32 %v971, %v976
  %980 = vrot.lane.b32.xlu0 %v978, 32
  %v981 = vpop.permute.xlu0 %980
  %v983 = vadd.f32 %v973, %v981
  %v984 = vtanh.pop %v983
  %986 = vrot.lane.b32.xlu0 %v984, 64
  %v987 = vpop.permute.xlu0 %986
  %v989 = vmul.f32 %v971, %v987
  %v990 = vld [vmem:[%s506] sm:$0xff]
  %992 = vrot.lane.b32.xlu0 %v989, 32
  %v993 = vpop.permute.xlu0 %992
  %v994 = vsel %vm136, %v993, 0
  %996 = vmatpush.msra.mxu0 0.0
  %997 = vmatpush.msra.mxu0 0.0
  %998 = vmatpush.msra.mxu0 0.0
  %999 = vmatpush.msra.mxu0 0.0
  %1000 = vmatpush.msra.mxu0 0.0
  %1001 = vmatpush.msra.mxu0 0.0
  %1002 = vmatpush.msra.mxu0 0.0
  %1003 = vmatpush.msra.mxu0 0.0
  %1004 = vmatpush.msra.mxu0 0.0
  %1005 = vmatpush.msra.mxu0 0.0
  %1006 = vmatpush.msra.mxu0 0.0
  %1007 = vmatpush.msra.mxu0 0.0
  %1008 = vmatpush.msra.mxu0 %v651
  %1009 = vmatpush.msra.mxu0 %v650
  %1010 = vmatpush.msra.mxu0 %v649
  %1011 = vmatpush.msra.mxu0 %v648
  %1012 = vmatmul.f32.gmra.mxu0 %v994
  %v1013 = vpop.f32.mrf.mxu0
  %v1014 = vadd.f32 0.0, %v1013
  %1015 = vdwg.mxu0
  %v1016 = vadd.f32 %v990, %v1014
  %v1017 = vmul.f32 %v1016, 0.5
  %v1018 = vtanh.pop %v1017
  %v1019 = vmul.f32 %v1018, 0.5
  %v1020 = vadd.f32 %v1019, 0.5
  %v1021 = vtanh.pop %v1016
  %v1022 = vmul.f32 %v1020, %v983
  %1024 = vrot.lane.b32.xlu0 %v1021, 64
  %v1025 = vpop.permute.xlu0 %1024
  %v1027 = vmul.f32 %v1020, %v1025
  %1029 = vrot.lane.b32.xlu0 %v1027, 32
  %v1030 = vpop.permute.xlu0 %1029
  %v1032 = vadd.f32 %v1022, %v1030
  %v1033 = vtanh.pop %v1032
  %1035 = vrot.lane.b32.xlu0 %v1033, 64
  %v1036 = vpop.permute.xlu0 %1035
  %v1038 = vmul.f32 %v1020, %v1036
  %v1039 = vld [vmem:[%s7] sm:$0xff]
  %v1040 = vld [vmem:[%s7 + $0x8] sm:$0xff]
  %v1041 = vld [vmem:[%s7 + $0x10] sm:$0xff]
  %v1042 = vld [vmem:[%s7 + $0x18] sm:$0xff]
  %v1043 = vld [vmem:[%s8] sm:$0x1]
  %v1045 = vperm.slane %v1043, 0
  %1048 = vrot.lane.b32.xlu0 %v1038, 32
  %v1049 = vpop.permute.xlu0 %1048
  %v1050 = vsel %vm136, %v1049, 0
  %1052 = vmatpush.msra.mxu0 0.0
  %1053 = vmatpush.msra.mxu0 0.0
  %1054 = vmatpush.msra.mxu0 0.0
  %1055 = vmatpush.msra.mxu0 0.0
  %1056 = vmatpush.msra.mxu0 0.0
  %1057 = vmatpush.msra.mxu0 0.0
  %1058 = vmatpush.msra.mxu0 0.0
  %1059 = vmatpush.msra.mxu0 0.0
  %1060 = vmatpush.msra.mxu0 0.0
  %1061 = vmatpush.msra.mxu0 0.0
  %1062 = vmatpush.msra.mxu0 0.0
  %1063 = vmatpush.msra.mxu0 0.0
  %1064 = vmatpush.msra.mxu0 %v1042
  %1065 = vmatpush.msra.mxu0 %v1041
  %1066 = vmatpush.msra.mxu0 %v1040
  %1067 = vmatpush.msra.mxu0 %v1039
  %1068 = vmatmul.f32.gmra.mxu0 %v1050
  %v1069 = vpop.f32.mrf.mxu0
  %v1070 = vadd.f32 %v1045, %v1069
  %1071 = vdwg.mxu0
  %vm1072 = vcmp.gt.f32.partialorder %v1070, 0.0
  %v1073 = vmul.f32 %v1070, 0.01
  %v1074 = vsel %vm1072, %v1070, %v1073
  %v1075 = vld [vmem:[%s9] sm:$0x1]
  %v1077 = vperm.slane %v1075, 0
  %v1079 = vmul.f32 %v1074, %v1077
  %vm1080 = vcmask 130048
  %v1081 = vsel %vm1080, %v1079, 0.0
  %1082 = vadd.xlane.f32.xlu0 %v1081
  %v1083 = vpop.xlane.xlu0 %1082
  %v1084 = vld [vmem:[#allocation4] sm:$0x1]
  %v1086 = vperm.slane %v1084, 0
  %v1088 = vadd.f32 %v1083, %v1086
  %vm1089 = vcmask 7168
  %1090 = vst.msk [vmem:[%s11] sm:$0xff] %vm1089, %v1088
  // Predicated region
  $region46: #{tpu_custom_call.1} parent=0 // pred_check
    _
  $region47: #{tpu_custom_call.1} parent=0 // pred_check_branch
    %1092 = sbr.rel (0) target = $region49
  $region48: #{tpu_custom_call.1} parent=0 // pred_region
    _
  $region49: #{tpu_custom_call.1} parent=0 // pred_fallthru
    _
  // Predicated region
  $region50: #{tpu_custom_call.1} parent=0 // pred_check
    _
  $region51: #{tpu_custom_call.1} parent=0 // pred_check_branch
    %1094 = sbr.rel (0) target = $region53
  $region52: #{tpu_custom_call.1} parent=0 // pred_region
    _
  $region53: #{tpu_custom_call.1} parent=0 // pred_fallthru
    _

</llo_original>
